<compile_context>
chip_gen: v5e
topology: v5e:2x2
jax: 0.10.0
libtpu: 0.0.40
codegen_flags: <defaults>
</compile_context>

<pallas_src>
import functools

import jax
import jax.numpy as jnp
from jax import lax
from jax.experimental import pallas as pl
from jax.experimental.pallas import tpu as pltpu


# ---------------------------------------------------------------------------
# Generation-aware sizing helpers
# ---------------------------------------------------------------------------
def _vmem_limit_bytes():
    """~62% of physical VMEM: ~80 MiB on v5e/v6e (128 MiB), ~40 MiB on v7x (64 MiB),
    leaving headroom for Mosaic internal scratch and the double buffers."""
    try:
        cap = getattr(pltpu.get_tpu_info(), "vmem_capacity_bytes", 64 << 20)
    except Exception:  # CPU / interpret / older API -> conservative default
        cap = 64 << 20
    return int(min(96 << 20, max(32 << 20, (cap * 5) // 8)))


def _pick_row_tile(n_rows, hbm_bytes_per_row, vmem_bytes_per_row, *, vmem_limit,
                   fold=1, target_step_bytes=2 << 20, min_steps=4):
    """Byte-sized row tile: big enough to amortize the ~0.35us/step pipeline
    overhead, small enough for the (double-buffered) VMEM budget, and split into
    >= min_steps grid steps so megacore / DMA-compute overlap have work."""
    mult = 8 * fold                      # sublane granularity x lane-fold factor
    if n_rows <= 2 * mult:
        return int(n_rows)               # full-extent block is always legal
    t = min(
        max(1, target_step_bytes // max(1, hbm_bytes_per_row)),
        max(1, (vmem_limit // 3) // max(1, vmem_bytes_per_row)),
        max(1, -(-n_rows // min_steps)),
        n_rows,
    )
    t = max(mult, (t // mult) * mult)
    return int(min(t, n_rows))


# ---------------------------------------------------------------------------
# In-kernel one-hot gather helper (VPU compare against a hoisted column iota)
# ---------------------------------------------------------------------------
def _oh(idx_col, cols, offset, dtype):
    """idx_col: [rows, 1] int32; cols: [rows, width] int32 iota.
    Returns a [rows, width] one-hot (1 at column offset + idx)."""
    return (idx_col + offset == cols).astype(dtype)


# ---------------------------------------------------------------------------
# Kernels
# ---------------------------------------------------------------------------
def _reduce_kernel(mp_ref, dbd_hi_ref, dbd_lo_ref, ibd_hi_ref, ibd_lo_ref, o_ref,
                   *, mean, fold, n_drug, n_dis):
    # mp_ref: [rows, fold*4] int32 (row-folded index table)
    # *_bd_* : block-diagonal bf16 hi/lo feature tables [fold*n, fold*F]
    idx = mp_ref[...]
    rows = idx.shape[0]
    wd, wi = fold * n_drug, fold * n_dis
    cols_d = lax.broadcasted_iota(jnp.int32, (rows, wd), 1)   # hoisted (no CSE in loop)
    cols_i = lax.broadcasted_iota(jnp.int32, (rows, wi), 1)
    oh_d = jnp.zeros((rows, wd), jnp.float32)
    oh_i = jnp.zeros((rows, wi), jnp.float32)
    for q in range(fold):                                     # static unroll, fold <= 16
        oh_d += _oh(idx[:, 4 * q + 0:4 * q + 1], cols_d, q * n_drug, jnp.float32)
        oh_d += _oh(idx[:, 4 * q + 1:4 * q + 2], cols_d, q * n_drug, jnp.float32)
        oh_i += _oh(idx[:, 4 * q + 2:4 * q + 3], cols_i, q * n_dis, jnp.float32)
        oh_i += _oh(idx[:, 4 * q + 3:4 * q + 4], cols_i, q * n_dis, jnp.float32)
    oh_d = oh_d.astype(jnp.bfloat16)        # values 0/1/2 -> exact in bf16
    oh_i = oh_i.astype(jnp.bfloat16)
    # bf16 hi+lo table split keeps the f32 gather+sum exact to ~2^-16 relative.
    s = jnp.dot(oh_d, dbd_hi_ref[...], preferred_element_type=jnp.float32)
    s += jnp.dot(oh_d, dbd_lo_ref[...], preferred_element_type=jnp.float32)
    s += jnp.dot(oh_i, ibd_hi_ref[...], preferred_element_type=jnp.float32)
    s += jnp.dot(oh_i, ibd_lo_ref[...], preferred_element_type=jnp.float32)
    if mean:
        s = s * 0.25
    o_ref[...] = s                          # [rows, fold*F] -> 128-lane-dense store


def _linear_kernel(mp_ref, fbd_ref, w_ref, o_ref, *, n_drug, n_dis):
    # fbd_ref: block-diag(fdrug, fdrug, fdis, fdis) [2nd+2ni, 4F] bf16
    # w_ref  : Linear weight transposed [4F, H] bf16
    idx = mp_ref[...]                                          # [tile_r, 4]
    rows = idx.shape[0]
    width = 2 * n_drug + 2 * n_dis
    cols = lax.broadcasted_iota(jnp.int32, (rows, width), 1)
    oh = (_oh(idx[:, 0:1], cols, 0, jnp.bfloat16)
          + _oh(idx[:, 1:2], cols, n_drug, jnp.bfloat16)
          + _oh(idx[:, 2:3], cols, 2 * n_drug, jnp.bfloat16)
          + _oh(idx[:, 3:4], cols, 2 * n_drug + n_dis, jnp.bfloat16))
    # One MXU dot gathers AND lane-concatenates: [tile, 2nd+2ni] @ [2nd+2ni, 4F].
    xcat = jnp.dot(oh, fbd_ref[...], preferred_element_type=jnp.float32)
    # Single full-depth K=4F matmul (no 4-way K=F split).
    # TODO(synk): lane-fold the output rows when H < 128 (currently H-wide store).
    o_ref[...] = jnp.dot(xcat.astype(jnp.bfloat16), w_ref[...],
                         preferred_element_type=jnp.float32)


def _bitrans_kernel(mp_ref, fdrug_ref, fdis_ref, wdd_ref, wdr_ref,
                    wdrug_ref, wdis_ref, o_ref, *, n_drug, n_dis):
    idx = mp_ref[...]                                          # [tile_r, 4]
    rows = idx.shape[0]
    cols_d = lax.broadcasted_iota(jnp.int32, (rows, n_drug), 1)
    cols_i = lax.broadcasted_iota(jnp.int32, (rows, n_dis), 1)
    fdrug = fdrug_ref[...]
    fdis = fdis_ref[...]
    # In-kernel gathers (bf16 one-hot @ bf16 table, f32 acc -> exact bf16 features).
    x0 = jnp.dot(_oh(idx[:, 0:1], cols_d, 0, jnp.bfloat16), fdrug,
                 preferred_element_type=jnp.float32)
    x1 = jnp.dot(_oh(idx[:, 1:2], cols_d, 0, jnp.bfloat16), fdrug,
                 preferred_element_type=jnp.float32)
    x2 = jnp.dot(_oh(idx[:, 2:3], cols_i, 0, jnp.bfloat16), fdis,
                 preferred_element_type=jnp.float32)
    x3 = jnp.dot(_oh(idx[:, 3:4], cols_i, 0, jnp.bfloat16), fdis,
                 preferred_element_type=jnp.float32)
    a_dd = ((x0 + x1) * 0.5).astype(jnp.bfloat16)
    a_dr = ((x3 + x2) * 0.5).astype(jnp.bfloat16)
    dis = ((jnp.dot(a_dd, wdd_ref[...], preferred_element_type=jnp.float32)
            + x2) * 0.5 + x3) * 0.5
    drug = ((jnp.dot(a_dr, wdr_ref[...], preferred_element_type=jnp.float32)
             + x1) * 0.5 + x0) * 0.5
    # Block-diagonal (zero-padded) output fusion -> ONE full-width [tile, Ho] store.
    # TODO(synk): for large Hh (MXU-bound) switch to two real-sized dots into a
    # VMEM f32 scratch to avoid the 2x padded FLOPs.
    out = jnp.dot(drug.astype(jnp.bfloat16), wdrug_ref[...],
                  preferred_element_type=jnp.float32)
    out += jnp.dot(dis.astype(jnp.bfloat16), wdis_ref[...],
                   preferred_element_type=jnp.float32)
    o_ref[...] = out


# ---------------------------------------------------------------------------
# One-time parameter preparation (hoisted out of the hot path)
# ---------------------------------------------------------------------------
def prepare_params(params):
    """Pre-transpose PyTorch-layout weights ([out,in] -> [in,out]) once, cast to
    bf16 for the MXU, and lane-pad the BiTrans projections for one full-width
    output store."""
    prep = {}
    if "linear" in params:
        prep["linear"] = params["linear"].T.astype(jnp.bfloat16)        # [4F, H]
    if "dd" in params:
        prep["dd"] = params["dd"].T.astype(jnp.bfloat16)                # [F, H]
        prep["dr"] = params["dr"].T.astype(jnp.bfloat16)                # [F, H]
        wdrug, wdis = params["drug"], params["dis"]                     # [Hh, F]
        F = wdrug.shape[1]
        Hh = wdrug.shape[0]
        zeros = jnp.zeros((F, Hh), jnp.float32)
        prep["drug_pad"] = jnp.concatenate([wdrug.T, zeros], 1).astype(jnp.bfloat16)
        prep["dis_pad"] = jnp.concatenate([zeros, wdis.T], 1).astype(jnp.bfloat16)
    return prep


# ---------------------------------------------------------------------------
# Wrapper
# ---------------------------------------------------------------------------
def meta_path_aggregator(feature_drug, feature_dis, mp_ins, prep, agg_type="sum"):
    """feature_drug: [n_drug, F], feature_dis: [n_dis, F], mp_ins: [B, M, 4] int32."""
    B, M, _ = mp_ins.shape
    n_drug, F = feature_drug.shape
    n_dis = feature_dis.shape[0]
    R = B * M
    vmem_limit = _vmem_limit_bytes()
    cparams = pltpu.CompilerParams(
        dimension_semantics=("parallel",),        # megacore sharding of the row axis
        vmem_limit_bytes=vmem_limit)
    mp_flat = mp_ins.reshape(R, 4).astype(jnp.int32)

    # NOTE: constant-index weight/table specs are small here; pl.Buffered(1)
    # single-buffering is intentionally skipped (negligible VMEM at these sizes).

    if agg_type in ("sum", "mean"):
        # Fold rows into lanes so the output block is 128-lane dense.
        fold = 1
        if F < 128 and 128 % F == 0 and R % (128 // F) == 0:
            fold = 128 // F
        # bf16 hi/lo split of the f32 tables (exact f32 gather+sum on a bf16 MXU).
        def split(t):
            hi = t.astype(jnp.bfloat16)
            lo = (t - hi.astype(jnp.float32)).astype(jnp.bfloat16)
            return hi, lo
        d_hi, d_lo = split(feature_drug)
        i_hi, i_lo = split(feature_dis)
        eye = jnp.eye(fold, dtype=jnp.bfloat16)
        dbd_hi, dbd_lo = jnp.kron(eye, d_hi), jnp.kron(eye, d_lo)   # [fold*n, fold*F]
        ibd_hi, ibd_lo = jnp.kron(eye, i_hi), jnp.kron(eye, i_lo)
        rows = R // fold
        mp_fold = mp_flat.reshape(rows, 4 * fold)                    # free view

        hbm_row = 16 + F * 4                                  # idx in + f32 out
        vmem_row = 2 * hbm_row + 4 * (n_drug + n_dis) + 8 * F
        tile_r = _pick_row_tile(R, hbm_row, vmem_row, vmem_limit=vmem_limit, fold=fold)
        rt = tile_r // fold
        grid = (pl.cdiv(rows, rt),)
        cost = pl.CostEstimate(
            flops=int(4 * R * (n_drug + n_dis) * F),
            transcendentals=0,
            bytes_accessed=int(R * 16 + R * F * 4 + 4 * fold * (n_drug + n_dis) * fold * F))
        out = pl.pallas_call(
            functools.partial(_reduce_kernel, mean=(agg_type == "mean"),
                              fold=fold, n_drug=n_drug, n_dis=n_dis),
            out_shape=jax.ShapeDtypeStruct((rows, fold * F), jnp.float32),
            grid=grid,
            in_specs=[pl.BlockSpec((rt, 4 * fold), lambda i: (i, 0)),
                      pl.BlockSpec((fold * n_drug, fold * F), lambda i: (0, 0)),
                      pl.BlockSpec((fold * n_drug, fold * F), lambda i: (0, 0)),
                      pl.BlockSpec((fold * n_dis, fold * F), lambda i: (0, 0)),
                      pl.BlockSpec((fold * n_dis, fold * F), lambda i: (0, 0))],
            out_specs=pl.BlockSpec((rt, fold * F), lambda i: (i, 0)),
            compiler_params=cparams,
            cost_estimate=cost,
        )(mp_fold, dbd_hi, dbd_lo, ibd_hi, ibd_lo)
        return out.reshape(B, M, F)

    if agg_type == "Linear":
        w = prep["linear"]                                    # [4F, H] bf16
        H = w.shape[1]
        fdrug_bf = feature_drug.astype(jnp.bfloat16)
        fdis_bf = feature_dis.astype(jnp.bfloat16)
        # block-diag(fdrug, fdrug, fdis, fdis): gather + lane-concat in ONE dot.
        nb = 2 * n_drug + 2 * n_dis
        fbd = jnp.zeros((nb, 4 * F), jnp.bfloat16)
        fbd = fbd.at[0:n_drug, 0:F].set(fdrug_bf)
        fbd = fbd.at[n_drug:2 * n_drug, F:2 * F].set(fdrug_bf)
        fbd = fbd.at[2 * n_drug:2 * n_drug + n_dis, 2 * F:3 * F].set(fdis_bf)
        fbd = fbd.at[2 * n_drug + n_dis:, 3 * F:].set(fdis_bf)

        hbm_row = 16 + H * 4
        vmem_row = 2 * hbm_row + 4 * nb + 6 * 4 * F
        tile_r = _pick_row_tile(R, hbm_row, vmem_row, vmem_limit=vmem_limit)
        grid = (pl.cdiv(R, tile_r),)
        cost = pl.CostEstimate(
            flops=int(2 * R * nb * 4 * F + 2 * R * 4 * F * H),
            transcendentals=0,
            bytes_accessed=int(R * 16 + R * H * 4 + nb * 4 * F * 2 + 4 * F * H * 2))
        out = pl.pallas_call(
            functools.partial(_linear_kernel, n_drug=n_drug, n_dis=n_dis),
            out_shape=jax.ShapeDtypeStruct((R, H), jnp.float32),
            grid=grid,
            in_specs=[pl.BlockSpec((tile_r, 4), lambda i: (i, 0)),
                      pl.BlockSpec((nb, 4 * F), lambda i: (0, 0)),
                      pl.BlockSpec((4 * F, H), lambda i: (0, 0))],
            out_specs=pl.BlockSpec((tile_r, H), lambda i: (i, 0)),
            compiler_params=cparams,
            cost_estimate=cost,
        )(mp_flat, fbd, w)
        return out.reshape(B, M, H)

    if agg_type == "BiTrans":
        wdd, wdr = prep["dd"], prep["dr"]                     # [F, H] bf16
        wdrug_p, wdis_p = prep["drug_pad"], prep["dis_pad"]   # [F, Ho] bf16
        H = wdd.shape[1]
        assert H == F, "BiTrans residual adds require hidden_feats == in_feats"
        Ho = wdrug_p.shape[1]
        fdrug_bf = feature_drug.astype(jnp.bfloat16)
        fdis_bf = feature_dis.astype(jnp.bfloat16)

        hbm_row = 16 + Ho * 4
        vmem_row = 2 * hbm_row + 4 * (n_drug + n_dis) + 8 * 4 * F
        tile_r = _pick_row_tile(R, hbm_row, vmem_row, vmem_limit=vmem_limit)
        grid = (pl.cdiv(R, tile_r),)
        cost = pl.CostEstimate(
            flops=int(4 * R * (n_drug + n_dis) * F + 2 * R * F * H * 2
                      + 2 * R * F * Ho * 2 + 10 * R * F),
            transcendentals=0,
            bytes_accessed=int(R * 16 + R * Ho * 4
                               + (n_drug + n_dis) * F * 2
                               + (2 * F * H + 2 * F * Ho) * 2))
        out = pl.pallas_call(
            functools.partial(_bitrans_kernel, n_drug=n_drug, n_dis=n_dis),
            out_shape=jax.ShapeDtypeStruct((R, Ho), jnp.float32),
            grid=grid,
            in_specs=[pl.BlockSpec((tile_r, 4), lambda i: (i, 0)),
                      pl.BlockSpec((n_drug, F), lambda i: (0, 0)),
                      pl.BlockSpec((n_dis, F), lambda i: (0, 0)),
                      pl.BlockSpec((F, H), lambda i: (0, 0)),
                      pl.BlockSpec((F, H), lambda i: (0, 0)),
                      pl.BlockSpec((F, Ho), lambda i: (0, 0)),
                      pl.BlockSpec((F, Ho), lambda i: (0, 0))],
            out_specs=pl.BlockSpec((tile_r, Ho), lambda i: (i, 0)),
            compiler_params=cparams,
            cost_estimate=cost,
        )(mp_flat, fdrug_bf, fdis_bf, wdd, wdr, wdrug_p, wdis_p)
        return out.reshape(B, M, Ho)

    raise ValueError(f"unknown agg_type {agg_type!r}")


# ---------------------------------------------------------------------------
# Deterministic parameter init (xavier_uniform, PyTorch convention [out, in])
# ---------------------------------------------------------------------------
def xavier_uniform(key, out_f, in_f):
    bound = (6.0 / (in_f + out_f)) ** 0.5
    return jax.random.uniform(key, (out_f, in_f), jnp.float32, -bound, bound)


if __name__ == "__main__":
    key = jax.random.PRNGKey(0)
    n_drug, n_dis = 10, 12
    B, M = 4, 256          # R = B*M = 1024 rows
    F = 32                 # in_feats  (sum/mean fold = 128 // 32 = 4)
    H = 32                 # hidden_feats (BiTrans path needs H == F)

    ks = jax.random.split(key, 9)
    feature_drug = jax.random.normal(ks[0], (n_drug, F), jnp.float32)
    feature_dis = jax.random.normal(ks[1], (n_dis, F), jnp.float32)
    mp_drug_idx = jax.random.randint(ks[2], (B, M, 2), 0, n_drug, dtype=jnp.int32)
    mp_dis_idx = jax.random.randint(ks[3], (B, M, 2), 0, n_dis, dtype=jnp.int32)
    mp_ins = jnp.concatenate([mp_drug_idx, mp_dis_idx], axis=-1)  # [B, M, 4]

    params = {
        "linear": xavier_uniform(ks[4], H, 4 * F),   # Linear(4F -> H)
        "dd": xavier_uniform(ks[5], H, F),           # drug_disease
        "dr": xavier_uniform(ks[6], H, F),           # disease_drug
        "drug": xavier_uniform(ks[7], H // 2, F),
        "dis": xavier_uniform(ks[8], H // 2, F),
    }
    prep = prepare_params(params)   # transpose / bf16-cast / pad ONCE

    out_sum = meta_path_aggregator(feature_drug, feature_dis, mp_ins, prep, "sum")
    out_mean = meta_path_aggregator(feature_drug, feature_dis, mp_ins, prep, "mean")
    out_lin = meta_path_aggregator(feature_drug, feature_dis, mp_ins, prep, "Linear")
    out_bi = meta_path_aggregator(feature_drug, feature_dis, mp_ins, prep, "BiTrans")
    jax.block_until_ready((out_sum, out_mean, out_lin, out_bi))

    # Pure-JAX f32 reference of the torch forward for correctness check.
    mp_feat = jnp.concatenate(
        [feature_drug[mp_ins[:, :, :2]], feature_dis[mp_ins[:, :, 2:]]], axis=2)
    ref_sum = mp_feat.sum(axis=2)
    ref_mean = mp_feat.mean(axis=2)
    xf = mp_feat.reshape(B, M, 4 * F)
    ref_lin = xf @ params["linear"].T
    x0r, x1r, x2r, x3r = (xf[:, :, i * F:(i + 1) * F] for i in range(4))
    ref_dis = ((((x0r + x1r) / 2) @ params["dd"].T + x2r) / 2 + x3r) / 2
    ref_drug = ((((x3r + x2r) / 2) @ params["dr"].T + x1r) / 2 + x0r) / 2
    ref_bi = jnp.concatenate(
        [ref_drug @ params["drug"].T, ref_dis @ params["dis"].T], axis=2)

    # sum/mean use a bf16 hi+lo table split (exact to ~2^-16 relative) -> tight
    # tolerance; Linear/BiTrans intentionally quantize activations/weights to
    # bf16 for the MXU (f32 accumulation) -> loose tolerance vs f32 reference.
    assert jnp.allclose(out_sum, ref_sum, atol=5e-4), "sum mismatch"
    assert jnp.allclose(out_mean, ref_mean, atol=5e-4), "mean mismatch"
    assert jnp.allclose(out_lin, ref_lin, atol=6e-2), "Linear mismatch"
    assert jnp.allclose(out_bi, ref_bi, atol=6e-2), "BiTrans mismatch"

    print("KERNEL_OK")
</pallas_src>

<mosaic_0001>
module attributes {stable_mosaic.version = 11 : i64} {
  func.func @_reduce_kernel(%arg0: i32, %arg1: memref<64x16xi32, #tpu.memory_space<vmem>>, %arg2: memref<40x128xbf16, #tpu.memory_space<vmem>>, %arg3: memref<40x128xbf16, #tpu.memory_space<vmem>>, %arg4: memref<48x128xbf16, #tpu.memory_space<vmem>>, %arg5: memref<48x128xbf16, #tpu.memory_space<vmem>>, %arg6: memref<64x128xf32, #tpu.memory_space<vmem>>) attributes {dimension_semantics = [#tpu.dimension_semantics<parallel>], iteration_bounds = array<i64: 4>, scalar_prefetch = 0 : i64, scratch_operands = 0 : i64, tpu.core_type = #tpu.core_type<tc>, window_params = [{transform_indices = @transform_0, window_bounds = array<i64: 64, 16>}, {pipeline_mode = #tpu.pipeline_mode<synchronous>, transform_indices = @transform_1, window_bounds = array<i64: 40, 128>}, {pipeline_mode = #tpu.pipeline_mode<synchronous>, transform_indices = @transform_2, window_bounds = array<i64: 40, 128>}, {pipeline_mode = #tpu.pipeline_mode<synchronous>, transform_indices = @transform_3, window_bounds = array<i64: 48, 128>}, {pipeline_mode = #tpu.pipeline_mode<synchronous>, transform_indices = @transform_4, window_bounds = array<i64: 48, 128>}, {transform_indices = @transform_5, window_bounds = array<i64: 64, 128>}]} {
    %c0 = arith.constant 0 : index
    %c0_0 = arith.constant 0 : index
    %0 = vector.load %arg1[%c0, %c0_0] : memref<64x16xi32, #tpu.memory_space<vmem>>, vector<64x16xi32>
    %1 = tpu.iota {dimensions = array<i32: 1>} : vector<64x40xi32>
    %2 = tpu.iota {dimensions = array<i32: 1>} : vector<64x48xi32>
    %cst = arith.constant 0.000000e+00 : f32
    %3 = vector.broadcast %cst : f32 to vector<64x40xf32>
    %cst_1 = arith.constant 0.000000e+00 : f32
    %4 = vector.broadcast %cst_1 : f32 to vector<64x48xf32>
    %5 = vector.extract_strided_slice %0 {offsets = [0, 0], sizes = [64, 1], strides = [1, 1]} : vector<64x16xi32> to vector<64x1xi32>
    %c0_i32 = arith.constant 0 : i32
    %6 = vector.broadcast %c0_i32 : i32 to vector<64x1xi32>
    %7 = arith.addi %5, %6 : vector<64x1xi32>
    %8 = vector.broadcast %7 : vector<64x1xi32> to vector<64x40xi32>
    %9 = arith.cmpi eq, %8, %1 : vector<64x40xi32>
    %10 = arith.extui %9 : vector<64x40xi1> to vector<64x40xi32>
    %11 = arith.sitofp %10 : vector<64x40xi32> to vector<64x40xf32>
    %12 = arith.addf %3, %11 : vector<64x40xf32>
    %13 = vector.extract_strided_slice %0 {offsets = [0, 1], sizes = [64, 1], strides = [1, 1]} : vector<64x16xi32> to vector<64x1xi32>
    %c0_i32_2 = arith.constant 0 : i32
    %14 = vector.broadcast %c0_i32_2 : i32 to vector<64x1xi32>
    %15 = arith.addi %13, %14 : vector<64x1xi32>
    %16 = vector.broadcast %15 : vector<64x1xi32> to vector<64x40xi32>
    %17 = arith.cmpi eq, %16, %1 : vector<64x40xi32>
    %18 = arith.extui %17 : vector<64x40xi1> to vector<64x40xi32>
    %19 = arith.sitofp %18 : vector<64x40xi32> to vector<64x40xf32>
    %20 = arith.addf %12, %19 : vector<64x40xf32>
    %21 = vector.extract_strided_slice %0 {offsets = [0, 2], sizes = [64, 1], strides = [1, 1]} : vector<64x16xi32> to vector<64x1xi32>
    %c0_i32_3 = arith.constant 0 : i32
    %22 = vector.broadcast %c0_i32_3 : i32 to vector<64x1xi32>
    %23 = arith.addi %21, %22 : vector<64x1xi32>
    %24 = vector.broadcast %23 : vector<64x1xi32> to vector<64x48xi32>
    %25 = arith.cmpi eq, %24, %2 : vector<64x48xi32>
    %26 = arith.extui %25 : vector<64x48xi1> to vector<64x48xi32>
    %27 = arith.sitofp %26 : vector<64x48xi32> to vector<64x48xf32>
    %28 = arith.addf %4, %27 : vector<64x48xf32>
    %29 = vector.extract_strided_slice %0 {offsets = [0, 3], sizes = [64, 1], strides = [1, 1]} : vector<64x16xi32> to vector<64x1xi32>
    %c0_i32_4 = arith.constant 0 : i32
    %30 = vector.broadcast %c0_i32_4 : i32 to vector<64x1xi32>
    %31 = arith.addi %29, %30 : vector<64x1xi32>
    %32 = vector.broadcast %31 : vector<64x1xi32> to vector<64x48xi32>
    %33 = arith.cmpi eq, %32, %2 : vector<64x48xi32>
    %34 = arith.extui %33 : vector<64x48xi1> to vector<64x48xi32>
    %35 = arith.sitofp %34 : vector<64x48xi32> to vector<64x48xf32>
    %36 = arith.addf %28, %35 : vector<64x48xf32>
    %37 = vector.extract_strided_slice %0 {offsets = [0, 4], sizes = [64, 1], strides = [1, 1]} : vector<64x16xi32> to vector<64x1xi32>
    %c10_i32 = arith.constant 10 : i32
    %38 = vector.broadcast %c10_i32 : i32 to vector<64x1xi32>
    %39 = arith.addi %37, %38 : vector<64x1xi32>
    %40 = vector.broadcast %39 : vector<64x1xi32> to vector<64x40xi32>
    %41 = arith.cmpi eq, %40, %1 : vector<64x40xi32>
    %42 = arith.extui %41 : vector<64x40xi1> to vector<64x40xi32>
    %43 = arith.sitofp %42 : vector<64x40xi32> to vector<64x40xf32>
    %44 = arith.addf %20, %43 : vector<64x40xf32>
    %45 = vector.extract_strided_slice %0 {offsets = [0, 5], sizes = [64, 1], strides = [1, 1]} : vector<64x16xi32> to vector<64x1xi32>
    %c10_i32_5 = arith.constant 10 : i32
    %46 = vector.broadcast %c10_i32_5 : i32 to vector<64x1xi32>
    %47 = arith.addi %45, %46 : vector<64x1xi32>
    %48 = vector.broadcast %47 : vector<64x1xi32> to vector<64x40xi32>
    %49 = arith.cmpi eq, %48, %1 : vector<64x40xi32>
    %50 = arith.extui %49 : vector<64x40xi1> to vector<64x40xi32>
    %51 = arith.sitofp %50 : vector<64x40xi32> to vector<64x40xf32>
    %52 = arith.addf %44, %51 : vector<64x40xf32>
    %53 = vector.extract_strided_slice %0 {offsets = [0, 6], sizes = [64, 1], strides = [1, 1]} : vector<64x16xi32> to vector<64x1xi32>
    %c12_i32 = arith.constant 12 : i32
    %54 = vector.broadcast %c12_i32 : i32 to vector<64x1xi32>
    %55 = arith.addi %53, %54 : vector<64x1xi32>
    %56 = vector.broadcast %55 : vector<64x1xi32> to vector<64x48xi32>
    %57 = arith.cmpi eq, %56, %2 : vector<64x48xi32>
    %58 = arith.extui %57 : vector<64x48xi1> to vector<64x48xi32>
    %59 = arith.sitofp %58 : vector<64x48xi32> to vector<64x48xf32>
    %60 = arith.addf %36, %59 : vector<64x48xf32>
    %61 = vector.extract_strided_slice %0 {offsets = [0, 7], sizes = [64, 1], strides = [1, 1]} : vector<64x16xi32> to vector<64x1xi32>
    %c12_i32_6 = arith.constant 12 : i32
    %62 = vector.broadcast %c12_i32_6 : i32 to vector<64x1xi32>
    %63 = arith.addi %61, %62 : vector<64x1xi32>
    %64 = vector.broadcast %63 : vector<64x1xi32> to vector<64x48xi32>
    %65 = arith.cmpi eq, %64, %2 : vector<64x48xi32>
    %66 = arith.extui %65 : vector<64x48xi1> to vector<64x48xi32>
    %67 = arith.sitofp %66 : vector<64x48xi32> to vector<64x48xf32>
    %68 = arith.addf %60, %67 : vector<64x48xf32>
    %69 = vector.extract_strided_slice %0 {offsets = [0, 8], sizes = [64, 1], strides = [1, 1]} : vector<64x16xi32> to vector<64x1xi32>
    %c20_i32 = arith.constant 20 : i32
    %70 = vector.broadcast %c20_i32 : i32 to vector<64x1xi32>
    %71 = arith.addi %69, %70 : vector<64x1xi32>
    %72 = vector.broadcast %71 : vector<64x1xi32> to vector<64x40xi32>
    %73 = arith.cmpi eq, %72, %1 : vector<64x40xi32>
    %74 = arith.extui %73 : vector<64x40xi1> to vector<64x40xi32>
    %75 = arith.sitofp %74 : vector<64x40xi32> to vector<64x40xf32>
    %76 = arith.addf %52, %75 : vector<64x40xf32>
    %77 = vector.extract_strided_slice %0 {offsets = [0, 9], sizes = [64, 1], strides = [1, 1]} : vector<64x16xi32> to vector<64x1xi32>
    %c20_i32_7 = arith.constant 20 : i32
    %78 = vector.broadcast %c20_i32_7 : i32 to vector<64x1xi32>
    %79 = arith.addi %77, %78 : vector<64x1xi32>
    %80 = vector.broadcast %79 : vector<64x1xi32> to vector<64x40xi32>
    %81 = arith.cmpi eq, %80, %1 : vector<64x40xi32>
    %82 = arith.extui %81 : vector<64x40xi1> to vector<64x40xi32>
    %83 = arith.sitofp %82 : vector<64x40xi32> to vector<64x40xf32>
    %84 = arith.addf %76, %83 : vector<64x40xf32>
    %85 = vector.extract_strided_slice %0 {offsets = [0, 10], sizes = [64, 1], strides = [1, 1]} : vector<64x16xi32> to vector<64x1xi32>
    %c24_i32 = arith.constant 24 : i32
    %86 = vector.broadcast %c24_i32 : i32 to vector<64x1xi32>
    %87 = arith.addi %85, %86 : vector<64x1xi32>
    %88 = vector.broadcast %87 : vector<64x1xi32> to vector<64x48xi32>
    %89 = arith.cmpi eq, %88, %2 : vector<64x48xi32>
    %90 = arith.extui %89 : vector<64x48xi1> to vector<64x48xi32>
    %91 = arith.sitofp %90 : vector<64x48xi32> to vector<64x48xf32>
    %92 = arith.addf %68, %91 : vector<64x48xf32>
    %93 = vector.extract_strided_slice %0 {offsets = [0, 11], sizes = [64, 1], strides = [1, 1]} : vector<64x16xi32> to vector<64x1xi32>
    %c24_i32_8 = arith.constant 24 : i32
    %94 = vector.broadcast %c24_i32_8 : i32 to vector<64x1xi32>
    %95 = arith.addi %93, %94 : vector<64x1xi32>
    %96 = vector.broadcast %95 : vector<64x1xi32> to vector<64x48xi32>
    %97 = arith.cmpi eq, %96, %2 : vector<64x48xi32>
    %98 = arith.extui %97 : vector<64x48xi1> to vector<64x48xi32>
    %99 = arith.sitofp %98 : vector<64x48xi32> to vector<64x48xf32>
    %100 = arith.addf %92, %99 : vector<64x48xf32>
    %101 = vector.extract_strided_slice %0 {offsets = [0, 12], sizes = [64, 1], strides = [1, 1]} : vector<64x16xi32> to vector<64x1xi32>
    %c30_i32 = arith.constant 30 : i32
    %102 = vector.broadcast %c30_i32 : i32 to vector<64x1xi32>
    %103 = arith.addi %101, %102 : vector<64x1xi32>
    %104 = vector.broadcast %103 : vector<64x1xi32> to vector<64x40xi32>
    %105 = arith.cmpi eq, %104, %1 : vector<64x40xi32>
    %106 = arith.extui %105 : vector<64x40xi1> to vector<64x40xi32>
    %107 = arith.sitofp %106 : vector<64x40xi32> to vector<64x40xf32>
    %108 = arith.addf %84, %107 : vector<64x40xf32>
    %109 = vector.extract_strided_slice %0 {offsets = [0, 13], sizes = [64, 1], strides = [1, 1]} : vector<64x16xi32> to vector<64x1xi32>
    %c30_i32_9 = arith.constant 30 : i32
    %110 = vector.broadcast %c30_i32_9 : i32 to vector<64x1xi32>
    %111 = arith.addi %109, %110 : vector<64x1xi32>
    %112 = vector.broadcast %111 : vector<64x1xi32> to vector<64x40xi32>
    %113 = arith.cmpi eq, %112, %1 : vector<64x40xi32>
    %114 = arith.extui %113 : vector<64x40xi1> to vector<64x40xi32>
    %115 = arith.sitofp %114 : vector<64x40xi32> to vector<64x40xf32>
    %116 = arith.addf %108, %115 : vector<64x40xf32>
    %117 = vector.extract_strided_slice %0 {offsets = [0, 14], sizes = [64, 1], strides = [1, 1]} : vector<64x16xi32> to vector<64x1xi32>
    %c36_i32 = arith.constant 36 : i32
    %118 = vector.broadcast %c36_i32 : i32 to vector<64x1xi32>
    %119 = arith.addi %117, %118 : vector<64x1xi32>
    %120 = vector.broadcast %119 : vector<64x1xi32> to vector<64x48xi32>
    %121 = arith.cmpi eq, %120, %2 : vector<64x48xi32>
    %122 = arith.extui %121 : vector<64x48xi1> to vector<64x48xi32>
    %123 = arith.sitofp %122 : vector<64x48xi32> to vector<64x48xf32>
    %124 = arith.addf %100, %123 : vector<64x48xf32>
    %125 = vector.extract_strided_slice %0 {offsets = [0, 15], sizes = [64, 1], strides = [1, 1]} : vector<64x16xi32> to vector<64x1xi32>
    %c36_i32_10 = arith.constant 36 : i32
    %126 = vector.broadcast %c36_i32_10 : i32 to vector<64x1xi32>
    %127 = arith.addi %125, %126 : vector<64x1xi32>
    %128 = vector.broadcast %127 : vector<64x1xi32> to vector<64x48xi32>
    %129 = arith.cmpi eq, %128, %2 : vector<64x48xi32>
    %130 = arith.extui %129 : vector<64x48xi1> to vector<64x48xi32>
    %131 = arith.sitofp %130 : vector<64x48xi32> to vector<64x48xf32>
    %132 = arith.addf %124, %131 : vector<64x48xf32>
    %133 = arith.truncf %116 : vector<64x40xf32> to vector<64x40xbf16>
    %134 = arith.truncf %132 : vector<64x48xf32> to vector<64x48xbf16>
    %c0_11 = arith.constant 0 : index
    %c0_12 = arith.constant 0 : index
    %135 = vector.load %arg2[%c0_11, %c0_12] : memref<40x128xbf16, #tpu.memory_space<vmem>>, vector<40x128xbf16>
    %cst_13 = arith.constant dense<0.000000e+00> : vector<64x128xf32>
    %136 = tpu.matmul %133, %135, %cst_13 {dimension_numbers = #tpu.dot_dimension_numbers<[1], [0], [0], [1], [0, 0, 1, 1], [], []>} : vector<64x40xbf16>, vector<40x128xbf16>, vector<64x128xf32> -> vector<64x128xf32>
    %c0_14 = arith.constant 0 : index
    %c0_15 = arith.constant 0 : index
    %137 = vector.load %arg3[%c0_14, %c0_15] : memref<40x128xbf16, #tpu.memory_space<vmem>>, vector<40x128xbf16>
    %cst_16 = arith.constant dense<0.000000e+00> : vector<64x128xf32>
    %138 = tpu.matmul %133, %137, %cst_16 {dimension_numbers = #tpu.dot_dimension_numbers<[1], [0], [0], [1], [0, 0, 1, 1], [], []>} : vector<64x40xbf16>, vector<40x128xbf16>, vector<64x128xf32> -> vector<64x128xf32>
    %139 = arith.addf %136, %138 : vector<64x128xf32>
    %c0_17 = arith.constant 0 : index
    %c0_18 = arith.constant 0 : index
    %140 = vector.load %arg4[%c0_17, %c0_18] : memref<48x128xbf16, #tpu.memory_space<vmem>>, vector<48x128xbf16>
    %cst_19 = arith.constant dense<0.000000e+00> : vector<64x128xf32>
    %141 = tpu.matmul %134, %140, %cst_19 {dimension_numbers = #tpu.dot_dimension_numbers<[1], [0], [0], [1], [0, 0, 1, 1], [], []>} : vector<64x48xbf16>, vector<48x128xbf16>, vector<64x128xf32> -> vector<64x128xf32>
    %142 = arith.addf %139, %141 : vector<64x128xf32>
    %c0_20 = arith.constant 0 : index
    %c0_21 = arith.constant 0 : index
    %143 = vector.load %arg5[%c0_20, %c0_21] : memref<48x128xbf16, #tpu.memory_space<vmem>>, vector<48x128xbf16>
    %cst_22 = arith.constant dense<0.000000e+00> : vector<64x128xf32>
    %144 = tpu.matmul %134, %143, %cst_22 {dimension_numbers = #tpu.dot_dimension_numbers<[1], [0], [0], [1], [0, 0, 1, 1], [], []>} : vector<64x48xbf16>, vector<48x128xbf16>, vector<64x128xf32> -> vector<64x128xf32>
    %145 = arith.addf %142, %144 : vector<64x128xf32>
    %c0_23 = arith.constant 0 : index
    %c0_24 = arith.constant 0 : index
    %146 = vector.load %arg6[%c0_23, %c0_24] : memref<64x128xf32, #tpu.memory_space<vmem>>, vector<64x128xf32>
    tpu.vector_store %arg6[%c0_23, %c0_24], %145 {strides = array<i32>} : memref<64x128xf32, #tpu.memory_space<vmem>>, vector<64x128xf32>,
    return
  }
  func.func @transform_0(%arg0: i32) -> (i32, i32) {
    %c0_i32 = arith.constant 0 : i32
    %c0_i32_0 = arith.constant 0 : i32
    return %arg0, %c0_i32 : i32, i32
  }
  func.func @transform_1(%arg0: i32) -> (i32, i32) {
    %c0_i32 = arith.constant 0 : i32
    %c0_i32_0 = arith.constant 0 : i32
    %c0_i32_1 = arith.constant 0 : i32
    return %c0_i32, %c0_i32_0 : i32, i32
  }
  func.func @transform_2(%arg0: i32) -> (i32, i32) {
    %c0_i32 = arith.constant 0 : i32
    %c0_i32_0 = arith.constant 0 : i32
    %c0_i32_1 = arith.constant 0 : i32
    return %c0_i32, %c0_i32_0 : i32, i32
  }
  func.func @transform_3(%arg0: i32) -> (i32, i32) {
    %c0_i32 = arith.constant 0 : i32
    %c0_i32_0 = arith.constant 0 : i32
    %c0_i32_1 = arith.constant 0 : i32
    return %c0_i32, %c0_i32_0 : i32, i32
  }
  func.func @transform_4(%arg0: i32) -> (i32, i32) {
    %c0_i32 = arith.constant 0 : i32
    %c0_i32_0 = arith.constant 0 : i32
    %c0_i32_1 = arith.constant 0 : i32
    return %c0_i32, %c0_i32_0 : i32, i32
  }
  func.func @transform_5(%arg0: i32) -> (i32, i32) {
    %c0_i32 = arith.constant 0 : i32
    %c0_i32_0 = arith.constant 0 : i32
    return %arg0, %c0_i32 : i32, i32
  }
}

</mosaic_0001>

<llo_original>
// kernel: tpu_custom_call.1
$region0: #{tpu_custom_call.1}
  #allocation0 [shape = 'u32[]', space=smem, size = 0x4, offset = 0x4, fixed_abs, tag = 'smem constant byte address 0x4 - core index']
  #allocation1 [shape = 'u32[72,128]{1,0:T(1,128)}', space=vmem, size = 0x9000, scoped, tag = 'internal scratch']
  %s0 = inlined_call_operand.vmem [shape: s32[256,16], index: 0, kind: input, shape index: {}]
  %s1 = inlined_call_operand.vmem [shape: bf16[40,128], index: 1, kind: input, shape index: {}]
  %s2 = inlined_call_operand.vmem [shape: bf16[40,128], index: 2, kind: input, shape index: {}]
  %s3 = inlined_call_operand.vmem [shape: bf16[48,128], index: 3, kind: input, shape index: {}]
  %s4 = inlined_call_operand.vmem [shape: bf16[48,128], index: 4, kind: input, shape index: {}]
  %s5 = inlined_call_operand.hbm [shape: f32[256,128], index: 5, kind: output, shape index: {}]
  %s6 = sld [smem:[#allocation0]]
  $region53: #{tpu_custom_call.1} parent=0
    _
  %s8 = ssub.s32 1, %s6
  %s9 = scalar_select 0, %s8, %s6
  $region1: #{tpu_custom_call.1} parent=0
    #allocation2 [shape = 'u8[65536]{0}', space=vmem, size = 0x10000, scoped, tag = 'output window, operand 0']
    #allocation3 [shape = 's32[2]{0}', space=sflag, size = 0x8, scoped, tag = 'scoped memory for tpu_custom_call.1']
    %10 = vsyncpa [#allocation3], 0
    %s11 = scalar_lea.sflag [#allocation3], 1
    %12 = vsyncpa %s11, 0
    loop: start=0, step=1, limit=6
    $region2: #{tpu_custom_call.1} parent=1 // loop_pre_header
      _
    $region3: #{tpu_custom_call.1} parent=1 // loop_header
      %s14 = sphi 0, %s18
      %p15 = scmp.ge.s32.totalorder %s14, 6
      %s24 = sphi 0, %s26
      %s27 = sphi 0, %s24
      %s28 = sphi 0, %s27
      %s44 = sphi 0, %s28
      %s48 = sphi 0, %s48
      %s50 = sphi 0, %s48
      %s51 = sphi 0, %s50
      %s65 = sphi 0, %s51
      %s69 = sphi 0, %s69
      %s71 = sphi 0, %s69
      %s72 = sphi 0, %s71
      %s86 = sphi 0, %s72
      %s90 = sphi 0, %s90
      %s92 = sphi 0, %s90
      %s93 = sphi 0, %s92
      %s107 = sphi 0, %s93
      %s111 = sphi 0, %s111
      %s113 = sphi 0, %s111
      %s114 = sphi 0, %s113
      %s128 = sphi 0, %s114
      %s134 = sphi 0, %s136
      %s137 = sphi 0, %s134
      %s138 = sphi 0, %s137
      %s154 = sphi 0, %s138
    $region4: #{tpu_custom_call.1} parent=1 // loop_header_branch
      %17 = sbr.rel (%p15) target = $region8
    $region5: #{tpu_custom_call.1} parent=1 // loop_body
      %s19 = ssub.s32 %s14, 1
      %s20 = ssub.s32 %s14, 2
      %s21 = sadd.s32 %s14, 1
      %s22 = ssub.s32 %s14, %s21
      %p23 = scmp.eq.s32.totalorder %s22, 0
      %s25 = sadd.s32 %s24, 1
      %s26 = scalar_select %p23, %s24, %s25
      %p29 = pneg %p23
      %p30 = scmp.eq.s32.totalorder %s14, 3
      %p31 = por %p29, %p30
      %p32 = scmp.ne.s32.totalorder %s24, %s27
      %p33 = scmp.eq.s32.totalorder %s14, 0
      %p34 = por %p32, %p33
      %p35 = scmp.ne.s32.totalorder %s24, %s27
      %p36 = scmp.eq.s32.totalorder %s19, 3
      %p37 = por %p35, %p36
      %p38 = scmp.ne.s32.totalorder %s27, %s28
      %p39 = scmp.eq.s32.totalorder %s19, 0
      %p40 = por %p38, %p39
      %p41 = scmp.ne.s32.totalorder %s27, %s28
      %p42 = scmp.eq.s32.totalorder %s20, 3
      %p43 = por %p41, %p42
      %p45 = scmp.ne.s32.totalorder %s28, %s44
      %p46 = scmp.eq.s32.totalorder %s20, 0
      %p47 = por %p45, %p46
      %s49 = sadd.s32 %s48, 1
      %p52 = scmp.eq.s32.totalorder %s14, 3
      %p53 = scmp.ne.s32.totalorder %s48, %s50
      %p54 = scmp.eq.s32.totalorder %s14, 0
      %p55 = por %p53, %p54
      %p56 = scmp.ne.s32.totalorder %s48, %s50
      %p57 = scmp.eq.s32.totalorder %s19, 3
      %p58 = por %p56, %p57
      %p59 = scmp.ne.s32.totalorder %s50, %s51
      %p60 = scmp.eq.s32.totalorder %s19, 0
      %p61 = por %p59, %p60
      %p62 = scmp.ne.s32.totalorder %s50, %s51
      %p63 = scmp.eq.s32.totalorder %s20, 3
      %p64 = por %p62, %p63
      %p66 = scmp.ne.s32.totalorder %s51, %s65
      %p67 = scmp.eq.s32.totalorder %s20, 0
      %p68 = por %p66, %p67
      %s70 = sadd.s32 %s69, 1
      %p73 = scmp.eq.s32.totalorder %s14, 3
      %p74 = scmp.ne.s32.totalorder %s69, %s71
      %p75 = scmp.eq.s32.totalorder %s14, 0
      %p76 = por %p74, %p75
      %p77 = scmp.ne.s32.totalorder %s69, %s71
      %p78 = scmp.eq.s32.totalorder %s19, 3
      %p79 = por %p77, %p78
      %p80 = scmp.ne.s32.totalorder %s71, %s72
      %p81 = scmp.eq.s32.totalorder %s19, 0
      %p82 = por %p80, %p81
      %p83 = scmp.ne.s32.totalorder %s71, %s72
      %p84 = scmp.eq.s32.totalorder %s20, 3
      %p85 = por %p83, %p84
      %p87 = scmp.ne.s32.totalorder %s72, %s86
      %p88 = scmp.eq.s32.totalorder %s20, 0
      %p89 = por %p87, %p88
      %s91 = sadd.s32 %s90, 1
      %p94 = scmp.eq.s32.totalorder %s14, 3
      %p95 = scmp.ne.s32.totalorder %s90, %s92
      %p96 = scmp.eq.s32.totalorder %s14, 0
      %p97 = por %p95, %p96
      %p98 = scmp.ne.s32.totalorder %s90, %s92
      %p99 = scmp.eq.s32.totalorder %s19, 3
      %p100 = por %p98, %p99
      %p101 = scmp.ne.s32.totalorder %s92, %s93
      %p102 = scmp.eq.s32.totalorder %s19, 0
      %p103 = por %p101, %p102
      %p104 = scmp.ne.s32.totalorder %s92, %s93
      %p105 = scmp.eq.s32.totalorder %s20, 3
      %p106 = por %p104, %p105
      %p108 = scmp.ne.s32.totalorder %s93, %s107
      %p109 = scmp.eq.s32.totalorder %s20, 0
      %p110 = por %p108, %p109
      %s112 = sadd.s32 %s111, 1
      %p115 = scmp.eq.s32.totalorder %s14, 3
      %p116 = scmp.ne.s32.totalorder %s111, %s113
      %p117 = scmp.eq.s32.totalorder %s14, 0
      %p118 = por %p116, %p117
      %p119 = scmp.ne.s32.totalorder %s111, %s113
      %p120 = scmp.eq.s32.totalorder %s19, 3
      %p121 = por %p119, %p120
      %p122 = scmp.ne.s32.totalorder %s113, %s114
      %p123 = scmp.eq.s32.totalorder %s19, 0
      %p124 = por %p122, %p123
      %p125 = scmp.ne.s32.totalorder %s113, %s114
      %p126 = scmp.eq.s32.totalorder %s20, 3
      %p127 = por %p125, %p126
      %p129 = scmp.ne.s32.totalorder %s114, %s128
      %p130 = scmp.eq.s32.totalorder %s20, 0
      %p131 = por %p129, %p130
      %s132 = ssub.s32 %s14, %s21
      %p133 = scmp.eq.s32.totalorder %s132, 0
      %s135 = sadd.s32 %s134, 1
      %s136 = scalar_select %p133, %s134, %s135
      %p139 = pneg %p133
      %p140 = scmp.eq.s32.totalorder %s14, 3
      %p141 = por %p139, %p140
      %p142 = scmp.ne.s32.totalorder %s134, %s137
      %p143 = scmp.eq.s32.totalorder %s14, 0
      %p144 = por %p142, %p143
      %p145 = scmp.ne.s32.totalorder %s134, %s137
      %p146 = scmp.eq.s32.totalorder %s19, 3
      %p147 = por %p145, %p146
      %p148 = scmp.ne.s32.totalorder %s137, %s138
      %p149 = scmp.eq.s32.totalorder %s19, 0
      %p150 = por %p148, %p149
      %p151 = scmp.ne.s32.totalorder %s137, %s138
      %p152 = scmp.eq.s32.totalorder %s20, 3
      %p153 = por %p151, %p152
      %p155 = scmp.ne.s32.totalorder %s138, %s154
      %p156 = scmp.eq.s32.totalorder %s20, 0
      %p157 = por %p155, %p156
      %p158 = scmp.le.s32.totalorder 1, %s14
      %p159 = scmp.lt.s32.totalorder %s14, 5
      %p160 = pnand %p158, %p159
      %p161 = pneg %p160
      // Predicated region
      $region9: #{tpu_custom_call.1} parent=5 // pred_check
        _
      $region10: #{tpu_custom_call.1} parent=5 // pred_check_branch
        %163 = sbr.rel (%p160) target = $region12
      $region11: #{tpu_custom_call.1} parent=5 // pred_region
        %s164 = ssub.s32 %s14, 1
        // Predicated region
        $region13: #{tpu_custom_call.1} parent=11 // pred_check
          %p165 = pneg %p61
        $region14: #{tpu_custom_call.1} parent=11 // pred_check_branch
          %167 = sbr.rel (%p165) target = $region16
        $region15: #{tpu_custom_call.1} parent=11 // pred_region
          _
        $region16: #{tpu_custom_call.1} parent=11 // pred_fallthru
          _
        // Predicated region
        $region17: #{tpu_custom_call.1} parent=11 // pred_check
          %p168 = pneg %p82
        $region18: #{tpu_custom_call.1} parent=11 // pred_check_branch
          %170 = sbr.rel (%p168) target = $region20
        $region19: #{tpu_custom_call.1} parent=11 // pred_region
          _
        $region20: #{tpu_custom_call.1} parent=11 // pred_fallthru
          _
        // Predicated region
        $region21: #{tpu_custom_call.1} parent=11 // pred_check
          %p171 = pneg %p103
        $region22: #{tpu_custom_call.1} parent=11 // pred_check_branch
          %173 = sbr.rel (%p171) target = $region24
        $region23: #{tpu_custom_call.1} parent=11 // pred_region
          _
        $region24: #{tpu_custom_call.1} parent=11 // pred_fallthru
          _
        // Predicated region
        $region25: #{tpu_custom_call.1} parent=11 // pred_check
          %p174 = pneg %p124
        $region26: #{tpu_custom_call.1} parent=11 // pred_check_branch
          %176 = sbr.rel (%p174) target = $region28
        $region27: #{tpu_custom_call.1} parent=11 // pred_region
          _
        $region28: #{tpu_custom_call.1} parent=11 // pred_fallthru
          _
      $region12: #{tpu_custom_call.1} parent=5 // pred_fallthru
        _
      %p177 = scmp.lt.s32.totalorder %s14, 4
      // Predicated region
      $region29: #{tpu_custom_call.1} parent=5 // pred_check
        %p178 = pneg %p177
      $region30: #{tpu_custom_call.1} parent=5 // pred_check_branch
        %180 = sbr.rel (%p178) target = $region32
      $region31: #{tpu_custom_call.1} parent=5 // pred_region
        // Predicated region
        $region33: #{tpu_custom_call.1} parent=31 // pred_check
          %p181 = pneg %p34
        $region34: #{tpu_custom_call.1} parent=31 // pred_check_branch
          %183 = sbr.rel (%p181) target = $region36
        $region35: #{tpu_custom_call.1} parent=31 // pred_region
          %s184 = smul.u32 8, %s14
          %p185 = scmp.lt.s32.totalorder %s184, 31
          %s186 = scalar_select %p185, %s184, 31
          %s187 = smul.addr %s186, 8
          %s188 = scalar_lea.vmem %s0, %s187
          %s189 = smul.u32 8, %s14
        $region36: #{tpu_custom_call.1} parent=31 // pred_fallthru
          _
      $region32: #{tpu_custom_call.1} parent=5 // pred_fallthru
        _
      %p190 = scmp.le.s32.totalorder 1, %s14
      %p191 = scmp.lt.s32.totalorder %s14, 5
      %p192 = pnand %p190, %p191
      %p193 = pneg %p192
      // Predicated region
      $region37: #{tpu_custom_call.1} parent=5 // pred_check
        _
      $region38: #{tpu_custom_call.1} parent=5 // pred_check_branch
        %195 = sbr.rel (%p192) target = $region40
      $region39: #{tpu_custom_call.1} parent=5 // pred_region
        %s196 = ssub.s32 %s14, 1
        %s197 = smul.u32 8, %s19
        %p198 = scmp.lt.s32.totalorder %s197, 31
        %s199 = scalar_select %p198, %s197, 31
        %s200 = smul.addr %s199, 8
        %s201 = scalar_lea.vmem %s0, %s200
        %p202 = pneg %p40
        %p203 = pneg %p37
        %p204 = pneg %p61
        %p205 = pneg %p58
        %p206 = pneg %p82
        %p207 = pneg %p79
        %p208 = pneg %p103
        %p209 = pneg %p100
        %p210 = pneg %p124
        %p211 = pneg %p121
        %p212 = pneg %p150
        %p213 = pneg %p147
        %s214 = sand.u32 %s137, 1
        %s215 = scalar_lea.sflag [#allocation3], %s214
        %s216 = sand.u32 %s137, 1
        %s217 = smul.addr %s216, 64
        %s218 = scalar_lea.vmem [#allocation2], %s217
        %s219 = smul.u32 8, %s19
        %p220 = scmp.lt.s32.totalorder %s219, 31
        %s221 = scalar_select %p220, %s219, 31
        %s222 = smul.addr %s221, 8
        %s223 = scalar_lea.vmem %s0, %s222
        %s224 = smul.u32 8, %s19
        %s225 = smul.u32 8, %s19
        %v227 = vld [vmem:[%s223] sm:$0xff]
        %v228 = vld [vmem:[%s223 + $0x8] sm:$0xff]
        %v229 = vld [vmem:[%s223 + $0x10] sm:$0xff]
        %v230 = vld [vmem:[%s223 + $0x18] sm:$0xff]
        %v231 = vld [vmem:[%s223 + $0x20] sm:$0xff]
        %v232 = vld [vmem:[%s223 + $0x28] sm:$0xff]
        %v233 = vld [vmem:[%s223 + $0x30] sm:$0xff]
        %v234 = vld [vmem:[%s223 + $0x38] sm:$0xff]
        %v235 = vlaneseq
        %v236 = vand.u32 %v235, 127
        %237 = vset.pattern.permute.xlu0 0
        %238 = vperm.xlu0 %237, %v227
        %v239 = vpop.permute.xlu0 %238
        %240 = vset.pattern.permute.xlu0 0
        %241 = vperm.xlu0 %240, %v228
        %v242 = vpop.permute.xlu0 %241
        %243 = vset.pattern.permute.xlu0 0
        %244 = vperm.xlu0 %243, %v229
        %v245 = vpop.permute.xlu0 %244
        %246 = vset.pattern.permute.xlu0 0
        %247 = vperm.xlu0 %246, %v230
        %v248 = vpop.permute.xlu0 %247
        %249 = vset.pattern.permute.xlu0 0
        %250 = vperm.xlu0 %249, %v231
        %v251 = vpop.permute.xlu0 %250
        %252 = vset.pattern.permute.xlu0 0
        %253 = vperm.xlu0 %252, %v232
        %v254 = vpop.permute.xlu0 %253
        %255 = vset.pattern.permute.xlu0 0
        %256 = vperm.xlu0 %255, %v233
        %v257 = vpop.permute.xlu0 %256
        %258 = vset.pattern.permute.xlu0 0
        %259 = vperm.xlu0 %258, %v234
        %v260 = vpop.permute.xlu0 %259
        %vm261 = vcmp.eq.s32.totalorder %v239, %v236
        %vm262 = vcmp.eq.s32.totalorder %v242, %v236
        %vm263 = vcmp.eq.s32.totalorder %v245, %v236
        %vm264 = vcmp.eq.s32.totalorder %v248, %v236
        %vm265 = vcmp.eq.s32.totalorder %v251, %v236
        %vm266 = vcmp.eq.s32.totalorder %v254, %v236
        %vm267 = vcmp.eq.s32.totalorder %v257, %v236
        %vm268 = vcmp.eq.s32.totalorder %v260, %v236
        %v269 = vsel %vm261, 1, 0
        %v270 = vsel %vm262, 1, 0
        %v271 = vsel %vm263, 1, 0
        %v272 = vsel %vm264, 1, 0
        %v273 = vsel %vm265, 1, 0
        %v274 = vsel %vm266, 1, 0
        %v275 = vsel %vm267, 1, 0
        %v276 = vsel %vm268, 1, 0
        %v277 = vcvt.s32.f32 %v269
        %v278 = vcvt.s32.f32 %v270
        %v279 = vcvt.s32.f32 %v271
        %v280 = vcvt.s32.f32 %v272
        %v281 = vcvt.s32.f32 %v273
        %v282 = vcvt.s32.f32 %v274
        %v283 = vcvt.s32.f32 %v275
        %v284 = vcvt.s32.f32 %v276
        %v285 = vadd.f32 %v277, 0.0
        %v286 = vadd.f32 %v278, 0.0
        %v287 = vadd.f32 %v279, 0.0
        %v288 = vadd.f32 %v280, 0.0
        %v289 = vadd.f32 %v281, 0.0
        %v290 = vadd.f32 %v282, 0.0
        %v291 = vadd.f32 %v283, 0.0
        %v292 = vadd.f32 %v284, 0.0
        %293 = vset.pattern.permute.xlu0 1
        %294 = vperm.xlu0 %293, %v227
        %v295 = vpop.permute.xlu0 %294
        %296 = vset.pattern.permute.xlu0 1
        %297 = vperm.xlu0 %296, %v228
        %v298 = vpop.permute.xlu0 %297
        %299 = vset.pattern.permute.xlu0 1
        %300 = vperm.xlu0 %299, %v229
        %v301 = vpop.permute.xlu0 %300
        %302 = vset.pattern.permute.xlu0 1
        %303 = vperm.xlu0 %302, %v230
        %v304 = vpop.permute.xlu0 %303
        %305 = vset.pattern.permute.xlu0 1
        %306 = vperm.xlu0 %305, %v231
        %v307 = vpop.permute.xlu0 %306
        %308 = vset.pattern.permute.xlu0 1
        %309 = vperm.xlu0 %308, %v232
        %v310 = vpop.permute.xlu0 %309
        %311 = vset.pattern.permute.xlu0 1
        %312 = vperm.xlu0 %311, %v233
        %v313 = vpop.permute.xlu0 %312
        %314 = vset.pattern.permute.xlu0 1
        %315 = vperm.xlu0 %314, %v234
        %v316 = vpop.permute.xlu0 %315
        %vm317 = vcmp.eq.s32.totalorder %v295, %v236
        %vm318 = vcmp.eq.s32.totalorder %v298, %v236
        %vm319 = vcmp.eq.s32.totalorder %v301, %v236
        %vm320 = vcmp.eq.s32.totalorder %v304, %v236
        %vm321 = vcmp.eq.s32.totalorder %v307, %v236
        %vm322 = vcmp.eq.s32.totalorder %v310, %v236
        %vm323 = vcmp.eq.s32.totalorder %v313, %v236
        %vm324 = vcmp.eq.s32.totalorder %v316, %v236
        %v325 = vsel %vm317, 1, 0
        %v326 = vsel %vm318, 1, 0
        %v327 = vsel %vm319, 1, 0
        %v328 = vsel %vm320, 1, 0
        %v329 = vsel %vm321, 1, 0
        %v330 = vsel %vm322, 1, 0
        %v331 = vsel %vm323, 1, 0
        %v332 = vsel %vm324, 1, 0
        %v333 = vcvt.s32.f32 %v325
        %v334 = vcvt.s32.f32 %v326
        %v335 = vcvt.s32.f32 %v327
        %v336 = vcvt.s32.f32 %v328
        %v337 = vcvt.s32.f32 %v329
        %v338 = vcvt.s32.f32 %v330
        %v339 = vcvt.s32.f32 %v331
        %v340 = vcvt.s32.f32 %v332
        %v341 = vadd.f32 %v285, %v333
        %v342 = vadd.f32 %v286, %v334
        %v343 = vadd.f32 %v287, %v335
        %v344 = vadd.f32 %v288, %v336
        %v345 = vadd.f32 %v289, %v337
        %v346 = vadd.f32 %v290, %v338
        %v347 = vadd.f32 %v291, %v339
        %v348 = vadd.f32 %v292, %v340
        %349 = vset.pattern.permute.xlu0 2
        %350 = vperm.xlu0 %349, %v227
        %v351 = vpop.permute.xlu0 %350
        %352 = vset.pattern.permute.xlu0 2
        %353 = vperm.xlu0 %352, %v228
        %v354 = vpop.permute.xlu0 %353
        %355 = vset.pattern.permute.xlu0 2
        %356 = vperm.xlu0 %355, %v229
        %v357 = vpop.permute.xlu0 %356
        %358 = vset.pattern.permute.xlu0 2
        %359 = vperm.xlu0 %358, %v230
        %v360 = vpop.permute.xlu0 %359
        %361 = vset.pattern.permute.xlu0 2
        %362 = vperm.xlu0 %361, %v231
        %v363 = vpop.permute.xlu0 %362
        %364 = vset.pattern.permute.xlu0 2
        %365 = vperm.xlu0 %364, %v232
        %v366 = vpop.permute.xlu0 %365
        %367 = vset.pattern.permute.xlu0 2
        %368 = vperm.xlu0 %367, %v233
        %v369 = vpop.permute.xlu0 %368
        %370 = vset.pattern.permute.xlu0 2
        %371 = vperm.xlu0 %370, %v234
        %v372 = vpop.permute.xlu0 %371
        %vm373 = vcmp.eq.s32.totalorder %v351, %v236
        %vm374 = vcmp.eq.s32.totalorder %v354, %v236
        %vm375 = vcmp.eq.s32.totalorder %v357, %v236
        %vm376 = vcmp.eq.s32.totalorder %v360, %v236
        %vm377 = vcmp.eq.s32.totalorder %v363, %v236
        %vm378 = vcmp.eq.s32.totalorder %v366, %v236
        %vm379 = vcmp.eq.s32.totalorder %v369, %v236
        %vm380 = vcmp.eq.s32.totalorder %v372, %v236
        %v381 = vsel %vm373, 1, 0
        %v382 = vsel %vm374, 1, 0
        %v383 = vsel %vm375, 1, 0
        %v384 = vsel %vm376, 1, 0
        %v385 = vsel %vm377, 1, 0
        %v386 = vsel %vm378, 1, 0
        %v387 = vsel %vm379, 1, 0
        %v388 = vsel %vm380, 1, 0
        %v389 = vcvt.s32.f32 %v381
        %v390 = vcvt.s32.f32 %v382
        %v391 = vcvt.s32.f32 %v383
        %v392 = vcvt.s32.f32 %v384
        %v393 = vcvt.s32.f32 %v385
        %v394 = vcvt.s32.f32 %v386
        %v395 = vcvt.s32.f32 %v387
        %v396 = vcvt.s32.f32 %v388
        %v397 = vadd.f32 %v389, 0.0
        %v398 = vadd.f32 %v390, 0.0
        %v399 = vadd.f32 %v391, 0.0
        %v400 = vadd.f32 %v392, 0.0
        %v401 = vadd.f32 %v393, 0.0
        %v402 = vadd.f32 %v394, 0.0
        %v403 = vadd.f32 %v395, 0.0
        %v404 = vadd.f32 %v396, 0.0
        %405 = vset.pattern.permute.xlu0 3
        %406 = vperm.xlu0 %405, %v227
        %v407 = vpop.permute.xlu0 %406
        %408 = vset.pattern.permute.xlu0 3
        %409 = vperm.xlu0 %408, %v228
        %v410 = vpop.permute.xlu0 %409
        %411 = vset.pattern.permute.xlu0 3
        %412 = vperm.xlu0 %411, %v229
        %v413 = vpop.permute.xlu0 %412
        %414 = vset.pattern.permute.xlu0 3
        %415 = vperm.xlu0 %414, %v230
        %v416 = vpop.permute.xlu0 %415
        %417 = vset.pattern.permute.xlu0 3
        %418 = vperm.xlu0 %417, %v231
        %v419 = vpop.permute.xlu0 %418
        %420 = vset.pattern.permute.xlu0 3
        %421 = vperm.xlu0 %420, %v232
        %v422 = vpop.permute.xlu0 %421
        %423 = vset.pattern.permute.xlu0 3
        %424 = vperm.xlu0 %423, %v233
        %v425 = vpop.permute.xlu0 %424
        %426 = vset.pattern.permute.xlu0 3
        %427 = vperm.xlu0 %426, %v234
        %v428 = vpop.permute.xlu0 %427
        %vm429 = vcmp.eq.s32.totalorder %v407, %v236
        %vm430 = vcmp.eq.s32.totalorder %v410, %v236
        %vm431 = vcmp.eq.s32.totalorder %v413, %v236
        %vm432 = vcmp.eq.s32.totalorder %v416, %v236
        %vm433 = vcmp.eq.s32.totalorder %v419, %v236
        %vm434 = vcmp.eq.s32.totalorder %v422, %v236
        %vm435 = vcmp.eq.s32.totalorder %v425, %v236
        %vm436 = vcmp.eq.s32.totalorder %v428, %v236
        %v437 = vsel %vm429, 1, 0
        %v438 = vsel %vm430, 1, 0
        %v439 = vsel %vm431, 1, 0
        %v440 = vsel %vm432, 1, 0
        %v441 = vsel %vm433, 1, 0
        %v442 = vsel %vm434, 1, 0
        %v443 = vsel %vm435, 1, 0
        %v444 = vsel %vm436, 1, 0
        %v445 = vcvt.s32.f32 %v437
        %v446 = vcvt.s32.f32 %v438
        %v447 = vcvt.s32.f32 %v439
        %v448 = vcvt.s32.f32 %v440
        %v449 = vcvt.s32.f32 %v441
        %v450 = vcvt.s32.f32 %v442
        %v451 = vcvt.s32.f32 %v443
        %v452 = vcvt.s32.f32 %v444
        %v453 = vadd.f32 %v397, %v445
        %v454 = vadd.f32 %v398, %v446
        %v455 = vadd.f32 %v399, %v447
        %v456 = vadd.f32 %v400, %v448
        %v457 = vadd.f32 %v401, %v449
        %v458 = vadd.f32 %v402, %v450
        %v459 = vadd.f32 %v403, %v451
        %v460 = vadd.f32 %v404, %v452
        %v461 = vadd.s32 %v227, 10
        %v462 = vadd.s32 %v228, 10
        %v463 = vadd.s32 %v229, 10
        %v464 = vadd.s32 %v230, 10
        %v465 = vadd.s32 %v231, 10
        %v466 = vadd.s32 %v232, 10
        %v467 = vadd.s32 %v233, 10
        %v468 = vadd.s32 %v234, 10
        %469 = vset.pattern.permute.xlu0 4
        %470 = vperm.xlu0 %469, %v461
        %v471 = vpop.permute.xlu0 %470
        %472 = vset.pattern.permute.xlu0 4
        %473 = vperm.xlu0 %472, %v462
        %v474 = vpop.permute.xlu0 %473
        %475 = vset.pattern.permute.xlu0 4
        %476 = vperm.xlu0 %475, %v463
        %v477 = vpop.permute.xlu0 %476
        %478 = vset.pattern.permute.xlu0 4
        %479 = vperm.xlu0 %478, %v464
        %v480 = vpop.permute.xlu0 %479
        %481 = vset.pattern.permute.xlu0 4
        %482 = vperm.xlu0 %481, %v465
        %v483 = vpop.permute.xlu0 %482
        %484 = vset.pattern.permute.xlu0 4
        %485 = vperm.xlu0 %484, %v466
        %v486 = vpop.permute.xlu0 %485
        %487 = vset.pattern.permute.xlu0 4
        %488 = vperm.xlu0 %487, %v467
        %v489 = vpop.permute.xlu0 %488
        %490 = vset.pattern.permute.xlu0 4
        %491 = vperm.xlu0 %490, %v468
        %v492 = vpop.permute.xlu0 %491
        %vm493 = vcmp.eq.s32.totalorder %v471, %v236
        %vm494 = vcmp.eq.s32.totalorder %v474, %v236
        %vm495 = vcmp.eq.s32.totalorder %v477, %v236
        %vm496 = vcmp.eq.s32.totalorder %v480, %v236
        %vm497 = vcmp.eq.s32.totalorder %v483, %v236
        %vm498 = vcmp.eq.s32.totalorder %v486, %v236
        %vm499 = vcmp.eq.s32.totalorder %v489, %v236
        %vm500 = vcmp.eq.s32.totalorder %v492, %v236
        %v501 = vsel %vm493, 1, 0
        %v502 = vsel %vm494, 1, 0
        %v503 = vsel %vm495, 1, 0
        %v504 = vsel %vm496, 1, 0
        %v505 = vsel %vm497, 1, 0
        %v506 = vsel %vm498, 1, 0
        %v507 = vsel %vm499, 1, 0
        %v508 = vsel %vm500, 1, 0
        %v509 = vcvt.s32.f32 %v501
        %v510 = vcvt.s32.f32 %v502
        %v511 = vcvt.s32.f32 %v503
        %v512 = vcvt.s32.f32 %v504
        %v513 = vcvt.s32.f32 %v505
        %v514 = vcvt.s32.f32 %v506
        %v515 = vcvt.s32.f32 %v507
        %v516 = vcvt.s32.f32 %v508
        %v517 = vadd.f32 %v341, %v509
        %v518 = vadd.f32 %v342, %v510
        %v519 = vadd.f32 %v343, %v511
        %v520 = vadd.f32 %v344, %v512
        %v521 = vadd.f32 %v345, %v513
        %v522 = vadd.f32 %v346, %v514
        %v523 = vadd.f32 %v347, %v515
        %v524 = vadd.f32 %v348, %v516
        %525 = vset.pattern.permute.xlu0 5
        %526 = vperm.xlu0 %525, %v461
        %v527 = vpop.permute.xlu0 %526
        %528 = vset.pattern.permute.xlu0 5
        %529 = vperm.xlu0 %528, %v462
        %v530 = vpop.permute.xlu0 %529
        %531 = vset.pattern.permute.xlu0 5
        %532 = vperm.xlu0 %531, %v463
        %v533 = vpop.permute.xlu0 %532
        %534 = vset.pattern.permute.xlu0 5
        %535 = vperm.xlu0 %534, %v464
        %v536 = vpop.permute.xlu0 %535
        %537 = vset.pattern.permute.xlu0 5
        %538 = vperm.xlu0 %537, %v465
        %v539 = vpop.permute.xlu0 %538
        %540 = vset.pattern.permute.xlu0 5
        %541 = vperm.xlu0 %540, %v466
        %v542 = vpop.permute.xlu0 %541
        %543 = vset.pattern.permute.xlu0 5
        %544 = vperm.xlu0 %543, %v467
        %v545 = vpop.permute.xlu0 %544
        %546 = vset.pattern.permute.xlu0 5
        %547 = vperm.xlu0 %546, %v468
        %v548 = vpop.permute.xlu0 %547
        %vm549 = vcmp.eq.s32.totalorder %v527, %v236
        %vm550 = vcmp.eq.s32.totalorder %v530, %v236
        %vm551 = vcmp.eq.s32.totalorder %v533, %v236
        %vm552 = vcmp.eq.s32.totalorder %v536, %v236
        %vm553 = vcmp.eq.s32.totalorder %v539, %v236
        %vm554 = vcmp.eq.s32.totalorder %v542, %v236
        %vm555 = vcmp.eq.s32.totalorder %v545, %v236
        %vm556 = vcmp.eq.s32.totalorder %v548, %v236
        %v557 = vsel %vm549, 1, 0
        %v558 = vsel %vm550, 1, 0
        %v559 = vsel %vm551, 1, 0
        %v560 = vsel %vm552, 1, 0
        %v561 = vsel %vm553, 1, 0
        %v562 = vsel %vm554, 1, 0
        %v563 = vsel %vm555, 1, 0
        %v564 = vsel %vm556, 1, 0
        %v565 = vcvt.s32.f32 %v557
        %v566 = vcvt.s32.f32 %v558
        %v567 = vcvt.s32.f32 %v559
        %v568 = vcvt.s32.f32 %v560
        %v569 = vcvt.s32.f32 %v561
        %v570 = vcvt.s32.f32 %v562
        %v571 = vcvt.s32.f32 %v563
        %v572 = vcvt.s32.f32 %v564
        %v573 = vadd.f32 %v517, %v565
        %v574 = vadd.f32 %v518, %v566
        %v575 = vadd.f32 %v519, %v567
        %v576 = vadd.f32 %v520, %v568
        %v577 = vadd.f32 %v521, %v569
        %v578 = vadd.f32 %v522, %v570
        %v579 = vadd.f32 %v523, %v571
        %v580 = vadd.f32 %v524, %v572
        %v581 = vadd.s32 %v227, 12
        %v582 = vadd.s32 %v228, 12
        %v583 = vadd.s32 %v229, 12
        %v584 = vadd.s32 %v230, 12
        %v585 = vadd.s32 %v231, 12
        %v586 = vadd.s32 %v232, 12
        %v587 = vadd.s32 %v233, 12
        %v588 = vadd.s32 %v234, 12
        %589 = vset.pattern.permute.xlu0 6
        %590 = vperm.xlu0 %589, %v581
        %v591 = vpop.permute.xlu0 %590
        %592 = vset.pattern.permute.xlu0 6
        %593 = vperm.xlu0 %592, %v582
        %v594 = vpop.permute.xlu0 %593
        %595 = vset.pattern.permute.xlu0 6
        %596 = vperm.xlu0 %595, %v583
        %v597 = vpop.permute.xlu0 %596
        %598 = vset.pattern.permute.xlu0 6
        %599 = vperm.xlu0 %598, %v584
        %v600 = vpop.permute.xlu0 %599
        %601 = vset.pattern.permute.xlu0 6
        %602 = vperm.xlu0 %601, %v585
        %v603 = vpop.permute.xlu0 %602
        %604 = vset.pattern.permute.xlu0 6
        %605 = vperm.xlu0 %604, %v586
        %v606 = vpop.permute.xlu0 %605
        %607 = vset.pattern.permute.xlu0 6
        %608 = vperm.xlu0 %607, %v587
        %v609 = vpop.permute.xlu0 %608
        %610 = vset.pattern.permute.xlu0 6
        %611 = vperm.xlu0 %610, %v588
        %v612 = vpop.permute.xlu0 %611
        %vm613 = vcmp.eq.s32.totalorder %v591, %v236
        %vm614 = vcmp.eq.s32.totalorder %v594, %v236
        %vm615 = vcmp.eq.s32.totalorder %v597, %v236
        %vm616 = vcmp.eq.s32.totalorder %v600, %v236
        %vm617 = vcmp.eq.s32.totalorder %v603, %v236
        %vm618 = vcmp.eq.s32.totalorder %v606, %v236
        %vm619 = vcmp.eq.s32.totalorder %v609, %v236
        %vm620 = vcmp.eq.s32.totalorder %v612, %v236
        %v621 = vsel %vm613, 1, 0
        %v622 = vsel %vm614, 1, 0
        %v623 = vsel %vm615, 1, 0
        %v624 = vsel %vm616, 1, 0
        %v625 = vsel %vm617, 1, 0
        %v626 = vsel %vm618, 1, 0
        %v627 = vsel %vm619, 1, 0
        %v628 = vsel %vm620, 1, 0
        %v629 = vcvt.s32.f32 %v621
        %v630 = vcvt.s32.f32 %v622
        %v631 = vcvt.s32.f32 %v623
        %v632 = vcvt.s32.f32 %v624
        %v633 = vcvt.s32.f32 %v625
        %v634 = vcvt.s32.f32 %v626
        %v635 = vcvt.s32.f32 %v627
        %v636 = vcvt.s32.f32 %v628
        %v637 = vadd.f32 %v453, %v629
        %v638 = vadd.f32 %v454, %v630
        %v639 = vadd.f32 %v455, %v631
        %v640 = vadd.f32 %v456, %v632
        %v641 = vadd.f32 %v457, %v633
        %v642 = vadd.f32 %v458, %v634
        %v643 = vadd.f32 %v459, %v635
        %v644 = vadd.f32 %v460, %v636
        %645 = vset.pattern.permute.xlu0 7
        %646 = vperm.xlu0 %645, %v581
        %v647 = vpop.permute.xlu0 %646
        %648 = vset.pattern.permute.xlu0 7
        %649 = vperm.xlu0 %648, %v582
        %v650 = vpop.permute.xlu0 %649
        %651 = vset.pattern.permute.xlu0 7
        %652 = vperm.xlu0 %651, %v583
        %v653 = vpop.permute.xlu0 %652
        %654 = vset.pattern.permute.xlu0 7
        %655 = vperm.xlu0 %654, %v584
        %v656 = vpop.permute.xlu0 %655
        %657 = vset.pattern.permute.xlu0 7
        %658 = vperm.xlu0 %657, %v585
        %v659 = vpop.permute.xlu0 %658
        %660 = vset.pattern.permute.xlu0 7
        %661 = vperm.xlu0 %660, %v586
        %v662 = vpop.permute.xlu0 %661
        %663 = vset.pattern.permute.xlu0 7
        %664 = vperm.xlu0 %663, %v587
        %v665 = vpop.permute.xlu0 %664
        %666 = vset.pattern.permute.xlu0 7
        %667 = vperm.xlu0 %666, %v588
        %v668 = vpop.permute.xlu0 %667
        %vm669 = vcmp.eq.s32.totalorder %v647, %v236
        %vm670 = vcmp.eq.s32.totalorder %v650, %v236
        %vm671 = vcmp.eq.s32.totalorder %v653, %v236
        %vm672 = vcmp.eq.s32.totalorder %v656, %v236
        %vm673 = vcmp.eq.s32.totalorder %v659, %v236
        %vm674 = vcmp.eq.s32.totalorder %v662, %v236
        %vm675 = vcmp.eq.s32.totalorder %v665, %v236
        %vm676 = vcmp.eq.s32.totalorder %v668, %v236
        %v677 = vsel %vm669, 1, 0
        %v678 = vsel %vm670, 1, 0
        %v679 = vsel %vm671, 1, 0
        %v680 = vsel %vm672, 1, 0
        %v681 = vsel %vm673, 1, 0
        %v682 = vsel %vm674, 1, 0
        %v683 = vsel %vm675, 1, 0
        %v684 = vsel %vm676, 1, 0
        %v685 = vcvt.s32.f32 %v677
        %v686 = vcvt.s32.f32 %v678
        %v687 = vcvt.s32.f32 %v679
        %v688 = vcvt.s32.f32 %v680
        %v689 = vcvt.s32.f32 %v681
        %v690 = vcvt.s32.f32 %v682
        %v691 = vcvt.s32.f32 %v683
        %v692 = vcvt.s32.f32 %v684
        %v693 = vadd.f32 %v637, %v685
        %v694 = vadd.f32 %v638, %v686
        %v695 = vadd.f32 %v639, %v687
        %v696 = vadd.f32 %v640, %v688
        %v697 = vadd.f32 %v641, %v689
        %v698 = vadd.f32 %v642, %v690
        %v699 = vadd.f32 %v643, %v691
        %v700 = vadd.f32 %v644, %v692
        %v701 = vadd.s32 %v227, 20
        %v702 = vadd.s32 %v228, 20
        %v703 = vadd.s32 %v229, 20
        %v704 = vadd.s32 %v230, 20
        %v705 = vadd.s32 %v231, 20
        %v706 = vadd.s32 %v232, 20
        %v707 = vadd.s32 %v233, 20
        %v708 = vadd.s32 %v234, 20
        %709 = vset.pattern.permute.xlu0 8
        %710 = vperm.xlu0 %709, %v701
        %v711 = vpop.permute.xlu0 %710
        %712 = vset.pattern.permute.xlu0 8
        %713 = vperm.xlu0 %712, %v702
        %v714 = vpop.permute.xlu0 %713
        %715 = vset.pattern.permute.xlu0 8
        %716 = vperm.xlu0 %715, %v703
        %v717 = vpop.permute.xlu0 %716
        %718 = vset.pattern.permute.xlu0 8
        %719 = vperm.xlu0 %718, %v704
        %v720 = vpop.permute.xlu0 %719
        %721 = vset.pattern.permute.xlu0 8
        %722 = vperm.xlu0 %721, %v705
        %v723 = vpop.permute.xlu0 %722
        %724 = vset.pattern.permute.xlu0 8
        %725 = vperm.xlu0 %724, %v706
        %v726 = vpop.permute.xlu0 %725
        %727 = vset.pattern.permute.xlu0 8
        %728 = vperm.xlu0 %727, %v707
        %v729 = vpop.permute.xlu0 %728
        %730 = vset.pattern.permute.xlu0 8
        %731 = vperm.xlu0 %730, %v708
        %v732 = vpop.permute.xlu0 %731
        %vm733 = vcmp.eq.s32.totalorder %v711, %v236
        %vm734 = vcmp.eq.s32.totalorder %v714, %v236
        %vm735 = vcmp.eq.s32.totalorder %v717, %v236
        %vm736 = vcmp.eq.s32.totalorder %v720, %v236
        %vm737 = vcmp.eq.s32.totalorder %v723, %v236
        %vm738 = vcmp.eq.s32.totalorder %v726, %v236
        %vm739 = vcmp.eq.s32.totalorder %v729, %v236
        %vm740 = vcmp.eq.s32.totalorder %v732, %v236
        %v741 = vsel %vm733, 1, 0
        %v742 = vsel %vm734, 1, 0
        %v743 = vsel %vm735, 1, 0
        %v744 = vsel %vm736, 1, 0
        %v745 = vsel %vm737, 1, 0
        %v746 = vsel %vm738, 1, 0
        %v747 = vsel %vm739, 1, 0
        %v748 = vsel %vm740, 1, 0
        %v749 = vcvt.s32.f32 %v741
        %v750 = vcvt.s32.f32 %v742
        %v751 = vcvt.s32.f32 %v743
        %v752 = vcvt.s32.f32 %v744
        %v753 = vcvt.s32.f32 %v745
        %v754 = vcvt.s32.f32 %v746
        %v755 = vcvt.s32.f32 %v747
        %v756 = vcvt.s32.f32 %v748
        %v757 = vadd.f32 %v573, %v749
        %v758 = vadd.f32 %v574, %v750
        %v759 = vadd.f32 %v575, %v751
        %v760 = vadd.f32 %v576, %v752
        %v761 = vadd.f32 %v577, %v753
        %v762 = vadd.f32 %v578, %v754
        %v763 = vadd.f32 %v579, %v755
        %v764 = vadd.f32 %v580, %v756
        %765 = vset.pattern.permute.xlu0 9
        %766 = vperm.xlu0 %765, %v701
        %v767 = vpop.permute.xlu0 %766
        %768 = vset.pattern.permute.xlu0 9
        %769 = vperm.xlu0 %768, %v702
        %v770 = vpop.permute.xlu0 %769
        %771 = vset.pattern.permute.xlu0 9
        %772 = vperm.xlu0 %771, %v703
        %v773 = vpop.permute.xlu0 %772
        %774 = vset.pattern.permute.xlu0 9
        %775 = vperm.xlu0 %774, %v704
        %v776 = vpop.permute.xlu0 %775
        %777 = vset.pattern.permute.xlu0 9
        %778 = vperm.xlu0 %777, %v705
        %v779 = vpop.permute.xlu0 %778
        %780 = vset.pattern.permute.xlu0 9
        %781 = vperm.xlu0 %780, %v706
        %v782 = vpop.permute.xlu0 %781
        %783 = vset.pattern.permute.xlu0 9
        %784 = vperm.xlu0 %783, %v707
        %v785 = vpop.permute.xlu0 %784
        %786 = vset.pattern.permute.xlu0 9
        %787 = vperm.xlu0 %786, %v708
        %v788 = vpop.permute.xlu0 %787
        %vm789 = vcmp.eq.s32.totalorder %v767, %v236
        %vm790 = vcmp.eq.s32.totalorder %v770, %v236
        %vm791 = vcmp.eq.s32.totalorder %v773, %v236
        %vm792 = vcmp.eq.s32.totalorder %v776, %v236
        %vm793 = vcmp.eq.s32.totalorder %v779, %v236
        %vm794 = vcmp.eq.s32.totalorder %v782, %v236
        %vm795 = vcmp.eq.s32.totalorder %v785, %v236
        %vm796 = vcmp.eq.s32.totalorder %v788, %v236
        %v797 = vsel %vm789, 1, 0
        %v798 = vsel %vm790, 1, 0
        %v799 = vsel %vm791, 1, 0
        %v800 = vsel %vm792, 1, 0
        %v801 = vsel %vm793, 1, 0
        %v802 = vsel %vm794, 1, 0
        %v803 = vsel %vm795, 1, 0
        %v804 = vsel %vm796, 1, 0
        %v805 = vcvt.s32.f32 %v797
        %v806 = vcvt.s32.f32 %v798
        %v807 = vcvt.s32.f32 %v799
        %v808 = vcvt.s32.f32 %v800
        %v809 = vcvt.s32.f32 %v801
        %v810 = vcvt.s32.f32 %v802
        %v811 = vcvt.s32.f32 %v803
        %v812 = vcvt.s32.f32 %v804
        %v813 = vadd.f32 %v757, %v805
        %v814 = vadd.f32 %v758, %v806
        %v815 = vadd.f32 %v759, %v807
        %v816 = vadd.f32 %v760, %v808
        %v817 = vadd.f32 %v761, %v809
        %v818 = vadd.f32 %v762, %v810
        %v819 = vadd.f32 %v763, %v811
        %v820 = vadd.f32 %v764, %v812
        %v821 = vadd.s32 %v227, 24
        %v822 = vadd.s32 %v228, 24
        %v823 = vadd.s32 %v229, 24
        %v824 = vadd.s32 %v230, 24
        %v825 = vadd.s32 %v231, 24
        %v826 = vadd.s32 %v232, 24
        %v827 = vadd.s32 %v233, 24
        %v828 = vadd.s32 %v234, 24
        %829 = vset.pattern.permute.xlu0 10
        %830 = vperm.xlu0 %829, %v821
        %v831 = vpop.permute.xlu0 %830
        %832 = vset.pattern.permute.xlu0 10
        %833 = vperm.xlu0 %832, %v822
        %v834 = vpop.permute.xlu0 %833
        %835 = vset.pattern.permute.xlu0 10
        %836 = vperm.xlu0 %835, %v823
        %v837 = vpop.permute.xlu0 %836
        %838 = vset.pattern.permute.xlu0 10
        %839 = vperm.xlu0 %838, %v824
        %v840 = vpop.permute.xlu0 %839
        %841 = vset.pattern.permute.xlu0 10
        %842 = vperm.xlu0 %841, %v825
        %v843 = vpop.permute.xlu0 %842
        %844 = vset.pattern.permute.xlu0 10
        %845 = vperm.xlu0 %844, %v826
        %v846 = vpop.permute.xlu0 %845
        %847 = vset.pattern.permute.xlu0 10
        %848 = vperm.xlu0 %847, %v827
        %v849 = vpop.permute.xlu0 %848
        %850 = vset.pattern.permute.xlu0 10
        %851 = vperm.xlu0 %850, %v828
        %v852 = vpop.permute.xlu0 %851
        %vm853 = vcmp.eq.s32.totalorder %v831, %v236
        %vm854 = vcmp.eq.s32.totalorder %v834, %v236
        %vm855 = vcmp.eq.s32.totalorder %v837, %v236
        %vm856 = vcmp.eq.s32.totalorder %v840, %v236
        %vm857 = vcmp.eq.s32.totalorder %v843, %v236
        %vm858 = vcmp.eq.s32.totalorder %v846, %v236
        %vm859 = vcmp.eq.s32.totalorder %v849, %v236
        %vm860 = vcmp.eq.s32.totalorder %v852, %v236
        %v861 = vsel %vm853, 1, 0
        %v862 = vsel %vm854, 1, 0
        %v863 = vsel %vm855, 1, 0
        %v864 = vsel %vm856, 1, 0
        %v865 = vsel %vm857, 1, 0
        %v866 = vsel %vm858, 1, 0
        %v867 = vsel %vm859, 1, 0
        %v868 = vsel %vm860, 1, 0
        %v869 = vcvt.s32.f32 %v861
        %v870 = vcvt.s32.f32 %v862
        %v871 = vcvt.s32.f32 %v863
        %v872 = vcvt.s32.f32 %v864
        %v873 = vcvt.s32.f32 %v865
        %v874 = vcvt.s32.f32 %v866
        %v875 = vcvt.s32.f32 %v867
        %v876 = vcvt.s32.f32 %v868
        %v877 = vadd.f32 %v693, %v869
        %v878 = vadd.f32 %v694, %v870
        %v879 = vadd.f32 %v695, %v871
        %v880 = vadd.f32 %v696, %v872
        %v881 = vadd.f32 %v697, %v873
        %v882 = vadd.f32 %v698, %v874
        %v883 = vadd.f32 %v699, %v875
        %v884 = vadd.f32 %v700, %v876
        %885 = vset.pattern.permute.xlu0 11
        %886 = vperm.xlu0 %885, %v821
        %v887 = vpop.permute.xlu0 %886
        %888 = vset.pattern.permute.xlu0 11
        %889 = vperm.xlu0 %888, %v822
        %v890 = vpop.permute.xlu0 %889
        %891 = vset.pattern.permute.xlu0 11
        %892 = vperm.xlu0 %891, %v823
        %v893 = vpop.permute.xlu0 %892
        %894 = vset.pattern.permute.xlu0 11
        %895 = vperm.xlu0 %894, %v824
        %v896 = vpop.permute.xlu0 %895
        %897 = vset.pattern.permute.xlu0 11
        %898 = vperm.xlu0 %897, %v825
        %v899 = vpop.permute.xlu0 %898
        %900 = vset.pattern.permute.xlu0 11
        %901 = vperm.xlu0 %900, %v826
        %v902 = vpop.permute.xlu0 %901
        %903 = vset.pattern.permute.xlu0 11
        %904 = vperm.xlu0 %903, %v827
        %v905 = vpop.permute.xlu0 %904
        %906 = vset.pattern.permute.xlu0 11
        %907 = vperm.xlu0 %906, %v828
        %v908 = vpop.permute.xlu0 %907
        %vm909 = vcmp.eq.s32.totalorder %v887, %v236
        %vm910 = vcmp.eq.s32.totalorder %v890, %v236
        %vm911 = vcmp.eq.s32.totalorder %v893, %v236
        %vm912 = vcmp.eq.s32.totalorder %v896, %v236
        %vm913 = vcmp.eq.s32.totalorder %v899, %v236
        %vm914 = vcmp.eq.s32.totalorder %v902, %v236
        %vm915 = vcmp.eq.s32.totalorder %v905, %v236
        %vm916 = vcmp.eq.s32.totalorder %v908, %v236
        %v917 = vsel %vm909, 1, 0
        %v918 = vsel %vm910, 1, 0
        %v919 = vsel %vm911, 1, 0
        %v920 = vsel %vm912, 1, 0
        %v921 = vsel %vm913, 1, 0
        %v922 = vsel %vm914, 1, 0
        %v923 = vsel %vm915, 1, 0
        %v924 = vsel %vm916, 1, 0
        %v925 = vcvt.s32.f32 %v917
        %v926 = vcvt.s32.f32 %v918
        %v927 = vcvt.s32.f32 %v919
        %v928 = vcvt.s32.f32 %v920
        %v929 = vcvt.s32.f32 %v921
        %v930 = vcvt.s32.f32 %v922
        %v931 = vcvt.s32.f32 %v923
        %v932 = vcvt.s32.f32 %v924
        %v933 = vadd.f32 %v877, %v925
        %v934 = vadd.f32 %v878, %v926
        %v935 = vadd.f32 %v879, %v927
        %v936 = vadd.f32 %v880, %v928
        %v937 = vadd.f32 %v881, %v929
        %v938 = vadd.f32 %v882, %v930
        %v939 = vadd.f32 %v883, %v931
        %v940 = vadd.f32 %v884, %v932
        %v941 = vadd.s32 %v227, 30
        %v942 = vadd.s32 %v228, 30
        %v943 = vadd.s32 %v229, 30
        %v944 = vadd.s32 %v230, 30
        %v945 = vadd.s32 %v231, 30
        %v946 = vadd.s32 %v232, 30
        %v947 = vadd.s32 %v233, 30
        %v948 = vadd.s32 %v234, 30
        %949 = vset.pattern.permute.xlu0 12
        %950 = vperm.xlu0 %949, %v941
        %v951 = vpop.permute.xlu0 %950
        %952 = vset.pattern.permute.xlu0 12
        %953 = vperm.xlu0 %952, %v942
        %v954 = vpop.permute.xlu0 %953
        %955 = vset.pattern.permute.xlu0 12
        %956 = vperm.xlu0 %955, %v943
        %v957 = vpop.permute.xlu0 %956
        %958 = vset.pattern.permute.xlu0 12
        %959 = vperm.xlu0 %958, %v944
        %v960 = vpop.permute.xlu0 %959
        %961 = vset.pattern.permute.xlu0 12
        %962 = vperm.xlu0 %961, %v945
        %v963 = vpop.permute.xlu0 %962
        %964 = vset.pattern.permute.xlu0 12
        %965 = vperm.xlu0 %964, %v946
        %v966 = vpop.permute.xlu0 %965
        %967 = vset.pattern.permute.xlu0 12
        %968 = vperm.xlu0 %967, %v947
        %v969 = vpop.permute.xlu0 %968
        %970 = vset.pattern.permute.xlu0 12
        %971 = vperm.xlu0 %970, %v948
        %v972 = vpop.permute.xlu0 %971
        %vm973 = vcmp.eq.s32.totalorder %v951, %v236
        %vm974 = vcmp.eq.s32.totalorder %v954, %v236
        %vm975 = vcmp.eq.s32.totalorder %v957, %v236
        %vm976 = vcmp.eq.s32.totalorder %v960, %v236
        %vm977 = vcmp.eq.s32.totalorder %v963, %v236
        %vm978 = vcmp.eq.s32.totalorder %v966, %v236
        %vm979 = vcmp.eq.s32.totalorder %v969, %v236
        %vm980 = vcmp.eq.s32.totalorder %v972, %v236
        %v981 = vsel %vm973, 1, 0
        %v982 = vsel %vm974, 1, 0
        %v983 = vsel %vm975, 1, 0
        %v984 = vsel %vm976, 1, 0
        %v985 = vsel %vm977, 1, 0
        %v986 = vsel %vm978, 1, 0
        %v987 = vsel %vm979, 1, 0
        %v988 = vsel %vm980, 1, 0
        %v989 = vcvt.s32.f32 %v981
        %v990 = vcvt.s32.f32 %v982
        %v991 = vcvt.s32.f32 %v983
        %v992 = vcvt.s32.f32 %v984
        %v993 = vcvt.s32.f32 %v985
        %v994 = vcvt.s32.f32 %v986
        %v995 = vcvt.s32.f32 %v987
        %v996 = vcvt.s32.f32 %v988
        %v997 = vadd.f32 %v813, %v989
        %v998 = vadd.f32 %v814, %v990
        %v999 = vadd.f32 %v815, %v991
        %v1000 = vadd.f32 %v816, %v992
        %v1001 = vadd.f32 %v817, %v993
        %v1002 = vadd.f32 %v818, %v994
        %v1003 = vadd.f32 %v819, %v995
        %v1004 = vadd.f32 %v820, %v996
        %1005 = vset.pattern.permute.xlu0 13
        %1006 = vperm.xlu0 %1005, %v941
        %v1007 = vpop.permute.xlu0 %1006
        %1008 = vset.pattern.permute.xlu0 13
        %1009 = vperm.xlu0 %1008, %v942
        %v1010 = vpop.permute.xlu0 %1009
        %1011 = vset.pattern.permute.xlu0 13
        %1012 = vperm.xlu0 %1011, %v943
        %v1013 = vpop.permute.xlu0 %1012
        %1014 = vset.pattern.permute.xlu0 13
        %1015 = vperm.xlu0 %1014, %v944
        %v1016 = vpop.permute.xlu0 %1015
        %1017 = vset.pattern.permute.xlu0 13
        %1018 = vperm.xlu0 %1017, %v945
        %v1019 = vpop.permute.xlu0 %1018
        %1020 = vset.pattern.permute.xlu0 13
        %1021 = vperm.xlu0 %1020, %v946
        %v1022 = vpop.permute.xlu0 %1021
        %1023 = vset.pattern.permute.xlu0 13
        %1024 = vperm.xlu0 %1023, %v947
        %v1025 = vpop.permute.xlu0 %1024
        %1026 = vset.pattern.permute.xlu0 13
        %1027 = vperm.xlu0 %1026, %v948
        %v1028 = vpop.permute.xlu0 %1027
        %vm1029 = vcmp.eq.s32.totalorder %v1007, %v236
        %vm1030 = vcmp.eq.s32.totalorder %v1010, %v236
        %vm1031 = vcmp.eq.s32.totalorder %v1013, %v236
        %vm1032 = vcmp.eq.s32.totalorder %v1016, %v236
        %vm1033 = vcmp.eq.s32.totalorder %v1019, %v236
        %vm1034 = vcmp.eq.s32.totalorder %v1022, %v236
        %vm1035 = vcmp.eq.s32.totalorder %v1025, %v236
        %vm1036 = vcmp.eq.s32.totalorder %v1028, %v236
        %v1037 = vsel %vm1029, 1, 0
        %v1038 = vsel %vm1030, 1, 0
        %v1039 = vsel %vm1031, 1, 0
        %v1040 = vsel %vm1032, 1, 0
        %v1041 = vsel %vm1033, 1, 0
        %v1042 = vsel %vm1034, 1, 0
        %v1043 = vsel %vm1035, 1, 0
        %v1044 = vsel %vm1036, 1, 0
        %v1045 = vcvt.s32.f32 %v1037
        %v1046 = vcvt.s32.f32 %v1038
        %v1047 = vcvt.s32.f32 %v1039
        %v1048 = vcvt.s32.f32 %v1040
        %v1049 = vcvt.s32.f32 %v1041
        %v1050 = vcvt.s32.f32 %v1042
        %v1051 = vcvt.s32.f32 %v1043
        %v1052 = vcvt.s32.f32 %v1044
        %v1053 = vadd.f32 %v997, %v1045
        %v1054 = vadd.f32 %v998, %v1046
        %v1055 = vadd.f32 %v999, %v1047
        %v1056 = vadd.f32 %v1000, %v1048
        %v1057 = vadd.f32 %v1001, %v1049
        %v1058 = vadd.f32 %v1002, %v1050
        %v1059 = vadd.f32 %v1003, %v1051
        %v1060 = vadd.f32 %v1004, %v1052
        %v1061 = vadd.s32 %v227, 36
        %v1062 = vadd.s32 %v228, 36
        %v1063 = vadd.s32 %v229, 36
        %v1064 = vadd.s32 %v230, 36
        %v1065 = vadd.s32 %v231, 36
        %v1066 = vadd.s32 %v232, 36
        %v1067 = vadd.s32 %v233, 36
        %v1068 = vadd.s32 %v234, 36
        %1069 = vset.pattern.permute.xlu0 14
        %1070 = vperm.xlu0 %1069, %v1061
        %v1071 = vpop.permute.xlu0 %1070
        %1072 = vset.pattern.permute.xlu0 14
        %1073 = vperm.xlu0 %1072, %v1062
        %v1074 = vpop.permute.xlu0 %1073
        %1075 = vset.pattern.permute.xlu0 14
        %1076 = vperm.xlu0 %1075, %v1063
        %v1077 = vpop.permute.xlu0 %1076
        %1078 = vset.pattern.permute.xlu0 14
        %1079 = vperm.xlu0 %1078, %v1064
        %v1080 = vpop.permute.xlu0 %1079
        %1081 = vset.pattern.permute.xlu0 14
        %1082 = vperm.xlu0 %1081, %v1065
        %v1083 = vpop.permute.xlu0 %1082
        %1084 = vset.pattern.permute.xlu0 14
        %1085 = vperm.xlu0 %1084, %v1066
        %v1086 = vpop.permute.xlu0 %1085
        %1087 = vset.pattern.permute.xlu0 14
        %1088 = vperm.xlu0 %1087, %v1067
        %v1089 = vpop.permute.xlu0 %1088
        %1090 = vset.pattern.permute.xlu0 14
        %1091 = vperm.xlu0 %1090, %v1068
        %v1092 = vpop.permute.xlu0 %1091
        %vm1093 = vcmp.eq.s32.totalorder %v1071, %v236
        %vm1094 = vcmp.eq.s32.totalorder %v1074, %v236
        %vm1095 = vcmp.eq.s32.totalorder %v1077, %v236
        %vm1096 = vcmp.eq.s32.totalorder %v1080, %v236
        %vm1097 = vcmp.eq.s32.totalorder %v1083, %v236
        %vm1098 = vcmp.eq.s32.totalorder %v1086, %v236
        %vm1099 = vcmp.eq.s32.totalorder %v1089, %v236
        %vm1100 = vcmp.eq.s32.totalorder %v1092, %v236
        %v1101 = vsel %vm1093, 1, 0
        %v1102 = vsel %vm1094, 1, 0
        %v1103 = vsel %vm1095, 1, 0
        %v1104 = vsel %vm1096, 1, 0
        %v1105 = vsel %vm1097, 1, 0
        %v1106 = vsel %vm1098, 1, 0
        %v1107 = vsel %vm1099, 1, 0
        %v1108 = vsel %vm1100, 1, 0
        %v1109 = vcvt.s32.f32 %v1101
        %v1110 = vcvt.s32.f32 %v1102
        %v1111 = vcvt.s32.f32 %v1103
        %v1112 = vcvt.s32.f32 %v1104
        %v1113 = vcvt.s32.f32 %v1105
        %v1114 = vcvt.s32.f32 %v1106
        %v1115 = vcvt.s32.f32 %v1107
        %v1116 = vcvt.s32.f32 %v1108
        %v1117 = vadd.f32 %v933, %v1109
        %v1118 = vadd.f32 %v934, %v1110
        %v1119 = vadd.f32 %v935, %v1111
        %v1120 = vadd.f32 %v936, %v1112
        %v1121 = vadd.f32 %v937, %v1113
        %v1122 = vadd.f32 %v938, %v1114
        %v1123 = vadd.f32 %v939, %v1115
        %v1124 = vadd.f32 %v940, %v1116
        %1125 = vset.pattern.permute.xlu0 15
        %1126 = vperm.xlu0 %1125, %v1061
        %v1127 = vpop.permute.xlu0 %1126
        %1128 = vset.pattern.permute.xlu0 15
        %1129 = vperm.xlu0 %1128, %v1062
        %v1130 = vpop.permute.xlu0 %1129
        %1131 = vset.pattern.permute.xlu0 15
        %1132 = vperm.xlu0 %1131, %v1063
        %v1133 = vpop.permute.xlu0 %1132
        %1134 = vset.pattern.permute.xlu0 15
        %1135 = vperm.xlu0 %1134, %v1064
        %v1136 = vpop.permute.xlu0 %1135
        %1137 = vset.pattern.permute.xlu0 15
        %1138 = vperm.xlu0 %1137, %v1065
        %v1139 = vpop.permute.xlu0 %1138
        %1140 = vset.pattern.permute.xlu0 15
        %1141 = vperm.xlu0 %1140, %v1066
        %v1142 = vpop.permute.xlu0 %1141
        %1143 = vset.pattern.permute.xlu0 15
        %1144 = vperm.xlu0 %1143, %v1067
        %v1145 = vpop.permute.xlu0 %1144
        %1146 = vset.pattern.permute.xlu0 15
        %1147 = vperm.xlu0 %1146, %v1068
        %v1148 = vpop.permute.xlu0 %1147
        %vm1149 = vcmp.eq.s32.totalorder %v1127, %v236
        %vm1150 = vcmp.eq.s32.totalorder %v1130, %v236
        %vm1151 = vcmp.eq.s32.totalorder %v1133, %v236
        %vm1152 = vcmp.eq.s32.totalorder %v1136, %v236
        %vm1153 = vcmp.eq.s32.totalorder %v1139, %v236
        %vm1154 = vcmp.eq.s32.totalorder %v1142, %v236
        %vm1155 = vcmp.eq.s32.totalorder %v1145, %v236
        %vm1156 = vcmp.eq.s32.totalorder %v1148, %v236
        %v1157 = vsel %vm1149, 1, 0
        %v1158 = vsel %vm1150, 1, 0
        %v1159 = vsel %vm1151, 1, 0
        %v1160 = vsel %vm1152, 1, 0
        %v1161 = vsel %vm1153, 1, 0
        %v1162 = vsel %vm1154, 1, 0
        %v1163 = vsel %vm1155, 1, 0
        %v1164 = vsel %vm1156, 1, 0
        %v1165 = vcvt.s32.f32 %v1157
        %v1166 = vcvt.s32.f32 %v1158
        %v1167 = vcvt.s32.f32 %v1159
        %v1168 = vcvt.s32.f32 %v1160
        %v1169 = vcvt.s32.f32 %v1161
        %v1170 = vcvt.s32.f32 %v1162
        %v1171 = vcvt.s32.f32 %v1163
        %v1172 = vcvt.s32.f32 %v1164
        %v1173 = vadd.f32 %v1117, %v1165
        %v1174 = vadd.f32 %v1118, %v1166
        %v1175 = vadd.f32 %v1119, %v1167
        %v1176 = vadd.f32 %v1120, %v1168
        %v1177 = vadd.f32 %v1121, %v1169
        %v1178 = vadd.f32 %v1122, %v1170
        %v1179 = vadd.f32 %v1123, %v1171
        %v1180 = vadd.f32 %v1124, %v1172
        %v1181 = vpack.c.bf16 %v1054, %v1053
        %v1182 = vpack.c.bf16 %v1056, %v1055
        %v1183 = vpack.c.bf16 %v1058, %v1057
        %v1184 = vpack.c.bf16 %v1060, %v1059
        %v1185 = vpack.c.bf16 %v1174, %v1173
        %v1186 = vpack.c.bf16 %v1176, %v1175
        %v1187 = vpack.c.bf16 %v1178, %v1177
        %v1188 = vpack.c.bf16 %v1180, %v1179
        %v1189 = vld [vmem:[%s1] sm:$0xf]
        %v1190 = vld [vmem:[%s1 + $0x4] sm:$0xf]
        %v1191 = vld [vmem:[%s1 + $0x8] sm:$0xf]
        %v1192 = vld [vmem:[%s1 + $0xc] sm:$0xf]
        %v1193 = vld [vmem:[%s1 + $0x10] sm:$0xf]
        %v1194 = vld [vmem:[%s2] sm:$0xf]
        %v1195 = vld [vmem:[%s2 + $0x4] sm:$0xf]
        %v1196 = vld [vmem:[%s2 + $0x8] sm:$0xf]
        %v1197 = vld [vmem:[%s2 + $0xc] sm:$0xf]
        %v1198 = vld [vmem:[%s2 + $0x10] sm:$0xf]
        %v1204 = vunpack.c.l.b16 %v1194
        %v1205 = vunpack.c.l.b16 %v1195
        %v1206 = vunpack.c.l.b16 %v1196
        %v1207 = vunpack.c.l.b16 %v1197
        %v1208 = vunpack.c.l.b16 %v1198
        %v1209 = vpack.c.b16 %v1205, %v1204
        %v1210 = vpack.c.b16 %v1207, %v1206
        %v1211 = vpack.c.b16 %v1208, %v1208
        %vm1214 = vcmask 326656
        %v1216 = vsel %vm1214, %v1181, 0
        %v1219 = vsel %vm1214, %v1182, 0
        %v1222 = vsel %vm1214, %v1183, 0
        %v1225 = vsel %vm1214, %v1184, 0
        %vm1227 = vcmask 1043456
        %v1229 = vsel %vm1227, %v1211, 0
        %1231 = vmatpush.bf16.msra.mxu0 0
        %1232 = vmatpush.bf16.msra.mxu0 0
        %1233 = vmatpush.bf16.msra.mxu0 0
        %1234 = vmatpush.bf16.msra.mxu0 0
        %1235 = vmatpush.bf16.msra.mxu0 0
        %1236 = vmatpush.bf16.msra.mxu0 %v1229
        %1237 = vmatpush.bf16.msra.mxu0 %v1210
        %1238 = vmatpush.bf16.msra.mxu0 %v1209
        %1239 = vmatmul.bf16.gmra.mxu0 %v1216
        %v1240 = vpop.f32.mrf.mxu0
        %v1241 = vadd.f32 0.0, %v1240
        %v1242 = vpop.f32.mrf.mxu0
        %v1243 = vadd.f32 0.0, %v1242
        %1244 = vmatmul.bf16.gmra.mxu0 %v1219
        %v1245 = vpop.f32.mrf.mxu0
        %v1246 = vadd.f32 0.0, %v1245
        %v1247 = vpop.f32.mrf.mxu0
        %v1248 = vadd.f32 0.0, %v1247
        %1249 = vmatmul.bf16.gmra.mxu0 %v1222
        %v1250 = vpop.f32.mrf.mxu0
        %v1251 = vadd.f32 0.0, %v1250
        %v1252 = vpop.f32.mrf.mxu0
        %v1253 = vadd.f32 0.0, %v1252
        %1254 = vmatmul.bf16.gmra.mxu0 %v1225
        %v1255 = vpop.f32.mrf.mxu0
        %v1256 = vadd.f32 0.0, %v1255
        %v1257 = vpop.f32.mrf.mxu0
        %v1258 = vadd.f32 0.0, %v1257
        %1259 = vdwg.mxu0
        %v1265 = vunpack.c.l.b16 %v1189
        %v1266 = vunpack.c.l.b16 %v1190
        %v1267 = vunpack.c.l.b16 %v1191
        %v1268 = vunpack.c.l.b16 %v1192
        %v1269 = vunpack.c.l.b16 %v1193
        %v1270 = vpack.c.b16 %v1266, %v1265
        %v1271 = vpack.c.b16 %v1268, %v1267
        %v1272 = vpack.c.b16 %v1269, %v1269
        %v1276 = vsel %vm1227, %v1272, 0
        %1278 = vmatpush.bf16.msra.mxu0 0
        %1279 = vmatpush.bf16.msra.mxu0 0
        %1280 = vmatpush.bf16.msra.mxu0 0
        %1281 = vmatpush.bf16.msra.mxu0 0
        %1282 = vmatpush.bf16.msra.mxu0 0
        %1283 = vmatpush.bf16.msra.mxu0 %v1276
        %1284 = vmatpush.bf16.msra.mxu0 %v1271
        %1285 = vmatpush.bf16.msra.mxu0 %v1270
        %1286 = vmatmul.bf16.gmra.mxu0 %v1216
        %v1287 = vpop.f32.mrf.mxu0
        %v1288 = vadd.f32 %v1241, %v1287
        %v1289 = vpop.f32.mrf.mxu0
        %v1290 = vadd.f32 %v1243, %v1289
        %1291 = vmatmul.bf16.gmra.mxu0 %v1219
        %v1292 = vpop.f32.mrf.mxu0
        %v1293 = vadd.f32 %v1246, %v1292
        %v1294 = vpop.f32.mrf.mxu0
        %v1295 = vadd.f32 %v1248, %v1294
        %1296 = vmatmul.bf16.gmra.mxu0 %v1222
        %v1297 = vpop.f32.mrf.mxu0
        %v1298 = vadd.f32 %v1251, %v1297
        %v1299 = vpop.f32.mrf.mxu0
        %v1300 = vadd.f32 %v1253, %v1299
        %1301 = vmatmul.bf16.gmra.mxu0 %v1225
        %v1302 = vpop.f32.mrf.mxu0
        %v1303 = vadd.f32 %v1256, %v1302
        %v1304 = vpop.f32.mrf.mxu0
        %v1305 = vadd.f32 %v1258, %v1304
        %1306 = vdwg.mxu0
        %v1307 = vld [vmem:[%s3] sm:$0xf]
        %v1308 = vld [vmem:[%s3 + $0x4] sm:$0xf]
        %v1309 = vld [vmem:[%s3 + $0x8] sm:$0xf]
        %v1310 = vld [vmem:[%s3 + $0xc] sm:$0xf]
        %v1311 = vld [vmem:[%s3 + $0x10] sm:$0xf]
        %v1312 = vld [vmem:[%s3 + $0x14] sm:$0xf]
        %v1319 = vunpack.c.l.b16 %v1307
        %v1320 = vunpack.c.l.b16 %v1308
        %v1321 = vunpack.c.l.b16 %v1309
        %v1322 = vunpack.c.l.b16 %v1310
        %v1323 = vunpack.c.l.b16 %v1311
        %v1324 = vunpack.c.l.b16 %v1312
        %v1325 = vpack.c.b16 %v1320, %v1319
        %v1326 = vpack.c.b16 %v1322, %v1321
        %v1327 = vpack.c.b16 %v1324, %v1323
        %vm1331 = vcmask 392192
        %v1333 = vsel %vm1331, %v1185, 0
        %v1336 = vsel %vm1331, %v1186, 0
        %v1339 = vsel %vm1331, %v1187, 0
        %v1342 = vsel %vm1331, %v1188, 0
        %1344 = vmatpush.bf16.msra.mxu0 0
        %1345 = vmatpush.bf16.msra.mxu0 0
        %1346 = vmatpush.bf16.msra.mxu0 0
        %1347 = vmatpush.bf16.msra.mxu0 0
        %1348 = vmatpush.bf16.msra.mxu0 0
        %1349 = vmatpush.bf16.msra.mxu0 %v1327
        %1350 = vmatpush.bf16.msra.mxu0 %v1326
        %1351 = vmatpush.bf16.msra.mxu0 %v1325
        %1352 = vmatmul.bf16.gmra.mxu0 %v1333
        %v1353 = vpop.f32.mrf.mxu0
        %v1354 = vadd.f32 0.0, %v1353
        %v1355 = vpop.f32.mrf.mxu0
        %v1356 = vadd.f32 0.0, %v1355
        %1357 = vmatmul.bf16.gmra.mxu0 %v1336
        %v1358 = vpop.f32.mrf.mxu0
        %v1359 = vadd.f32 0.0, %v1358
        %v1360 = vpop.f32.mrf.mxu0
        %v1361 = vadd.f32 0.0, %v1360
        %1362 = vmatmul.bf16.gmra.mxu0 %v1339
        %v1363 = vpop.f32.mrf.mxu0
        %v1364 = vadd.f32 0.0, %v1363
        %v1365 = vpop.f32.mrf.mxu0
        %v1366 = vadd.f32 0.0, %v1365
        %1367 = vmatmul.bf16.gmra.mxu0 %v1342
        %v1368 = vpop.f32.mrf.mxu0
        %v1369 = vadd.f32 0.0, %v1368
        %v1370 = vpop.f32.mrf.mxu0
        %v1371 = vadd.f32 0.0, %v1370
        %1372 = vdwg.mxu0
        %v1373 = vadd.f32 %v1288, %v1354
        %v1374 = vadd.f32 %v1290, %v1356
        %v1375 = vadd.f32 %v1293, %v1359
        %v1376 = vadd.f32 %v1295, %v1361
        %v1377 = vadd.f32 %v1298, %v1364
        %v1378 = vadd.f32 %v1300, %v1366
        %v1379 = vadd.f32 %v1303, %v1369
        %v1380 = vadd.f32 %v1305, %v1371
        %v1381 = vld [vmem:[%s4] sm:$0xf]
        %v1382 = vld [vmem:[%s4 + $0x4] sm:$0xf]
        %v1383 = vld [vmem:[%s4 + $0x8] sm:$0xf]
        %v1384 = vld [vmem:[%s4 + $0xc] sm:$0xf]
        %v1385 = vld [vmem:[%s4 + $0x10] sm:$0xf]
        %v1386 = vld [vmem:[%s4 + $0x14] sm:$0xf]
        %v1393 = vunpack.c.l.b16 %v1381
        %v1394 = vunpack.c.l.b16 %v1382
        %v1395 = vunpack.c.l.b16 %v1383
        %v1396 = vunpack.c.l.b16 %v1384
        %v1397 = vunpack.c.l.b16 %v1385
        %v1398 = vunpack.c.l.b16 %v1386
        %v1399 = vpack.c.b16 %v1394, %v1393
        %v1400 = vpack.c.b16 %v1396, %v1395
        %v1401 = vpack.c.b16 %v1398, %v1397
        %1405 = vmatpush.bf16.msra.mxu0 0
        %1406 = vmatpush.bf16.msra.mxu0 0
        %1407 = vmatpush.bf16.msra.mxu0 0
        %1408 = vmatpush.bf16.msra.mxu0 0
        %1409 = vmatpush.bf16.msra.mxu0 0
        %1410 = vmatpush.bf16.msra.mxu0 %v1401
        %1411 = vmatpush.bf16.msra.mxu0 %v1400
        %1412 = vmatpush.bf16.msra.mxu0 %v1399
        %1413 = vmatmul.bf16.gmra.mxu0 %v1333
        %v1414 = vpop.f32.mrf.mxu0
        %v1415 = vadd.f32 0.0, %v1414
        %v1416 = vpop.f32.mrf.mxu0
        %v1417 = vadd.f32 0.0, %v1416
        %1418 = vmatmul.bf16.gmra.mxu0 %v1336
        %v1419 = vpop.f32.mrf.mxu0
        %v1420 = vadd.f32 0.0, %v1419
        %v1421 = vpop.f32.mrf.mxu0
        %v1422 = vadd.f32 0.0, %v1421
        %1423 = vmatmul.bf16.gmra.mxu0 %v1339
        %v1424 = vpop.f32.mrf.mxu0
        %v1425 = vadd.f32 0.0, %v1424
        %v1426 = vpop.f32.mrf.mxu0
        %v1427 = vadd.f32 0.0, %v1426
        %1428 = vmatmul.bf16.gmra.mxu0 %v1342
        %v1429 = vpop.f32.mrf.mxu0
        %v1430 = vadd.f32 0.0, %v1429
        %v1431 = vpop.f32.mrf.mxu0
        %v1432 = vadd.f32 0.0, %v1431
        %1433 = vdwg.mxu0
        %v1434 = vadd.f32 %v1373, %v1415
        %v1435 = vadd.f32 %v1374, %v1417
        %v1436 = vadd.f32 %v1375, %v1420
        %v1437 = vadd.f32 %v1376, %v1422
        %v1438 = vadd.f32 %v1377, %v1425
        %v1439 = vadd.f32 %v1378, %v1427
        %v1440 = vadd.f32 %v1379, %v1430
        %v1441 = vadd.f32 %v1380, %v1432
        %1442 = vst [vmem:[%s218] sm:$0xff] %v1434
        %1443 = vst [vmem:[%s218 + $0x8] sm:$0xff] %v1435
        %1444 = vst [vmem:[%s218 + $0x10] sm:$0xff] %v1436
        %1445 = vst [vmem:[%s218 + $0x18] sm:$0xff] %v1437
        %1446 = vst [vmem:[%s218 + $0x20] sm:$0xff] %v1438
        %1447 = vst [vmem:[%s218 + $0x28] sm:$0xff] %v1439
        %1448 = vst [vmem:[%s218 + $0x30] sm:$0xff] %v1440
        %1449 = vst [vmem:[%s218 + $0x38] sm:$0xff] %v1441
        %s1450 = sand.u32 %s137, 1
        %s1451 = scalar_lea.sflag [#allocation3], %s1450
        %s1452 = sand.u32 %s137, 1
        %s1453 = smul.addr %s1452, 64
        %s1454 = scalar_lea.vmem [#allocation2], %s1453
        // Predicated region
        $region41: #{tpu_custom_call.1} parent=39 // pred_check
          %p1455 = pneg %p147
        $region42: #{tpu_custom_call.1} parent=39 // pred_check_branch
          %1457 = sbr.rel (%p1455) target = $region44
        $region43: #{tpu_custom_call.1} parent=39 // pred_region
          %s1458 = smul.u32 8, %s19
          %1460 = vsyncadd %s1451, 0
          %s1461 = smul.addr %s1458, 8
          %s1462 = scalar_lea.hbm %s5, %s1461
          %s1463 = sshll.u32 %s1454, 4
          %s1464 = int_to_ptr.vmem [resolvable:$true] %s1463
          %s1465 = sshll.u32 %s1462, 4
          %s1466 = int_to_ptr.hbm [resolvable:$true] %s1465
          %1471 = dma.vmem_to_hbm [thread:$0]  %s1464, 1024, %s1466, %s1451, 128, 128, 8
        $region44: #{tpu_custom_call.1} parent=39 // pred_fallthru
          _
      $region40: #{tpu_custom_call.1} parent=5 // pred_fallthru
        _
      %p1472 = scmp.le.s32.totalorder 2, %s14
      // Predicated region
      $region45: #{tpu_custom_call.1} parent=5 // pred_check
        %p1473 = pneg %p1472
      $region46: #{tpu_custom_call.1} parent=5 // pred_check_branch
        %1475 = sbr.rel (%p1473) target = $region48
      $region47: #{tpu_custom_call.1} parent=5 // pred_region
        %s1476 = ssub.s32 %s14, 2
        // Predicated region
        $region49: #{tpu_custom_call.1} parent=47 // pred_check
          %p1477 = pneg %p153
        $region50: #{tpu_custom_call.1} parent=47 // pred_check_branch
          %1479 = sbr.rel (%p1477) target = $region52
        $region51: #{tpu_custom_call.1} parent=47 // pred_region
          %s1480 = sand.u32 %s138, 1
          %s1481 = scalar_lea.sflag [#allocation3], %s1480
          %s1482 = sand.u32 %s138, 1
          %s1483 = smul.addr %s1482, 64
          %s1484 = scalar_lea.vmem [#allocation2], %s1483
          %1486 = dma.done %s1481, 1024
        $region52: #{tpu_custom_call.1} parent=47 // pred_fallthru
          _
      $region48: #{tpu_custom_call.1} parent=5 // pred_fallthru
        _
    $region6: #{tpu_custom_call.1} parent=1 // loop_footer
      %s18 = sadd.s32 1, %s14
    $region7: #{tpu_custom_call.1} parent=1 // loop_footer_branch
      %13 = sbr.rel target = $region3
    $region8: #{tpu_custom_call.1} parent=1 // loop_exit
      _
    %1487 = vsyncpa [#allocation3], 1
    %s1488 = scalar_lea.sflag [#allocation3], 1
    %1489 = vsyncpa %s1488, 1

</llo_original>
